<compile_context>
chip_gen: v6e
topology: v6e:2x2x1
jax: 0.10.0
libtpu: 0.0.40
codegen_flags: <defaults>
</compile_context>

<pallas_src>
import functools

import jax
import jax.numpy as jnp
from jax.experimental import pallas as pl
from jax.experimental.pallas import tpu as pltpu

DEFAULT_TILE_N = 4096   # node rows per grid step (review: 2048-8192 sweet spot; 128-lane aligned)
NUM_CORES = 2           # leading "parallel" axis: 2-TC split on v7x, harmless serial loop on v5e/v6e


def encode_pool_kernel(batch_ref, x_ref, w1_ref, b1_ref, w2_ref, partial_ref):
    """Per node tile: E = ReLU(X@W1 + b1) @ W2, then accumulate per-graph sums."""
    i = pl.program_id(1)                     # node-tile index within this core's range
    num_graphs = partial_ref.shape[0]
    tile_n = x_ref.shape[0]

    @pl.when(i == 0)
    def _init():                             # re-zeroed at the start of each core's slab
        partial_ref[...] = jnp.zeros_like(partial_ref)

    # ---- encode: bf16 operands into the MXU, f32 accumulation ----
    h = jnp.dot(x_ref[...], w1_ref[...], preferred_element_type=jnp.float32) + b1_ref[...]
    h = jnp.maximum(h, 0.0)
    # NOTE: "+ b2" hoisted to the finalize kernel (mean of a constant row == that constant).
    e = jnp.dot(h.astype(jnp.bfloat16), w2_ref[...], preferred_element_type=jnp.float32)

    # ---- segment-sum pooling: in-kernel one-hot, bf16 MXU path (assign is exact 0/1) ----
    gids = jax.lax.broadcasted_iota(jnp.int32, (num_graphs, tile_n), 0)
    assign = (batch_ref[...] == gids).astype(jnp.bfloat16)            # [G, tile_n]
    partial_ref[...] += jnp.dot(assign, e.astype(jnp.bfloat16),
                                preferred_element_type=jnp.float32)   # [G, D]


def classify_loss_kernel(partial_ref, invc_ref, b2_ref, wc_ref, bc_ref, y_ref, loss_ref):
    """Combine per-core pooled partials -> mean pool -> classifier -> mean CE loss."""
    num_graphs = invc_ref.shape[0]
    pooled = jnp.sum(partial_ref[...], axis=0) * invc_ref[...] + b2_ref[...]    # [G, D]
    logits = jnp.dot(pooled, wc_ref[...], preferred_element_type=jnp.float32) + bc_ref[...]
    m = jnp.max(logits, axis=-1, keepdims=True)
    z = logits - m
    lse = jnp.log(jnp.sum(jnp.exp(z), axis=-1, keepdims=True))
    logp = z - lse
    nll = -jnp.sum(y_ref[...] * logp, axis=-1, keepdims=True)                   # [G, 1]
    loss_ref[0, 0] = jnp.sum(nll) * (1.0 / num_graphs)


@functools.partial(jax.jit, static_argnames=("tile_n", "num_cores"))
def encoder_decoder_forward(x, w1, b1, w2, b2, batch, counts, wc, bc, y_onehot,
                            *, tile_n=DEFAULT_TILE_N, num_cores=NUM_CORES):
    n, f_in = x.shape
    hid = w1.shape[1]
    d = w2.shape[1]
    g, c = y_onehot.shape

    # ---- tiling: big node tiles amortize per-grid-step overhead; clamp for tiny inputs ----
    per_core = -(-n // num_cores)
    tile_n_eff = min(tile_n, -(-per_core // 128) * 128)       # keep 128-lane aligned
    tiles_per_core = -(-per_core // tile_n_eff)
    n_padded = num_cores * tiles_per_core * tile_n_eff

    if n_padded != n:
        x = jnp.pad(x, ((0, n_padded - n), (0, 0)))
        batch = jnp.pad(batch, (0, n_padded - n), constant_values=-1)   # never pools
    x_bf = x.astype(jnp.bfloat16)
    w1_bf = w1.astype(jnp.bfloat16)
    w2_bf = w2.astype(jnp.bfloat16)
    batch2d = batch.reshape(1, n_padded).astype(jnp.int32)
    inv_counts = 1.0 / jnp.maximum(counts.astype(jnp.float32), 1.0)     # empty-graph guard

    flops = (2 * n_padded * f_in * hid + 2 * n_padded * hid * d + 2 * g * n_padded * d)
    bytes_accessed = (x_bf.size * 2 + batch2d.size * 4 + w1_bf.size * 2 + b1.size * 4
                      + w2_bf.size * 2 + num_cores * g * d * 4)

    def resident(shape):
        return pl.BlockSpec(shape, lambda cc, ii: (0, 0))

    # ---- kernel 1: streamed encode + per-graph pooled partial sums (one slab per core) ----
    partials = pl.pallas_call(
        encode_pool_kernel,
        out_shape=jax.ShapeDtypeStruct((num_cores, g, d), jnp.float32),
        grid=(num_cores, tiles_per_core),
        in_specs=[
            pl.BlockSpec((1, tile_n_eff),
                         lambda cc, ii: (0, cc * tiles_per_core + ii)),    # batch ids
            pl.BlockSpec((tile_n_eff, f_in),
                         lambda cc, ii: (cc * tiles_per_core + ii, 0)),    # X tile (bf16)
            resident((f_in, hid)),                                         # W1 (bf16)
            resident((1, hid)),                                            # b1
            resident((hid, d)),                                            # W2 (bf16)
        ],
        out_specs=pl.BlockSpec((None, g, d), lambda cc, ii: (cc, 0, 0)),   # resident acc / core
        compiler_params=pltpu.CompilerParams(
            dimension_semantics=("parallel", "arbitrary"),   # core split x node reduction
            vmem_limit_bytes=48 * 1024 * 1024,               # headroom below v7x's 64 MiB
        ),
        cost_estimate=pl.CostEstimate(flops=flops, transcendentals=0,
                                      bytes_accessed=bytes_accessed),
    )(batch2d, x_bf, w1_bf, b1, w2_bf)

    # ---- kernel 2: tiny combine + classifier + CE (G x D), scalar loss in SMEM ----
    loss = pl.pallas_call(
        classify_loss_kernel,
        out_shape=jax.ShapeDtypeStruct((1, 1), jnp.float32),
        in_specs=[pl.BlockSpec(memory_space=pltpu.MemorySpace.VMEM)] * 6,
        out_specs=pl.BlockSpec(memory_space=pltpu.MemorySpace.SMEM),
    )(partials, inv_counts, b2, wc, bc, y_onehot)

    return loss[0, 0]


def reference_forward(x, w1, b1, w2, b2, batch, counts, wc, bc, y_onehot):
    g = y_onehot.shape[0]
    h = jnp.maximum(jnp.dot(x.astype(jnp.bfloat16), w1.astype(jnp.bfloat16),
                            preferred_element_type=jnp.float32) + b1, 0.0)
    e = jnp.dot(h.astype(jnp.bfloat16), w2.astype(jnp.bfloat16),
                preferred_element_type=jnp.float32) + b2
    assign = (batch[None, :] == jnp.arange(g)[:, None]).astype(jnp.float32)
    pooled = (assign @ e) / jnp.maximum(counts, 1.0)
    logits = jnp.dot(pooled, wc, preferred_element_type=jnp.float32) + bc
    logp = jax.nn.log_softmax(logits, axis=-1)
    return jnp.mean(-jnp.sum(y_onehot * logp, axis=-1))


if __name__ == "__main__":
    key = jax.random.PRNGKey(0)
    N, F_IN, HID, D, G, C = 640, 128, 128, 128, 8, 8    # N not a tile multiple -> padding path

    ks = jax.random.split(key, 9)
    x  = jax.random.normal(ks[0], (N, F_IN), dtype=jnp.float32)
    w1 = jax.random.normal(ks[1], (F_IN, HID), dtype=jnp.float32) * 0.1
    b1 = jax.random.normal(ks[2], (1, HID), dtype=jnp.float32) * 0.1
    w2 = jax.random.normal(ks[3], (HID, D), dtype=jnp.float32) * 0.1
    b2 = jax.random.normal(ks[4], (1, D), dtype=jnp.float32) * 0.1
    wc = jax.random.normal(ks[5], (D, C), dtype=jnp.float32) * 0.1
    bc = jax.random.normal(ks[6], (1, C), dtype=jnp.float32) * 0.1

    # data.batch: graph id per node (shuffled, N//G nodes per graph)
    batch = jax.random.permutation(
        ks[7], jnp.repeat(jnp.arange(G, dtype=jnp.int32), N // G))
    counts = jnp.sum((batch[None, :] == jnp.arange(G)[:, None]).astype(jnp.float32),
                     axis=1, keepdims=True)                                   # [G, 1]

    labels = jax.random.randint(ks[8], (G,), 0, C)
    y_onehot = jax.nn.one_hot(labels, C, dtype=jnp.float32)                   # [G, C]

    ref = reference_forward(x, w1, b1, w2, b2, batch, counts, wc, bc, y_onehot)

    # default config: large (clamped) tile, 2-way core split
    loss = jax.block_until_ready(
        encoder_decoder_forward(x, w1, b1, w2, b2, batch, counts, wc, bc, y_onehot))
    assert jnp.allclose(loss, ref, rtol=5e-3, atol=5e-3), (loss, ref)

    # small-tile config: exercises the multi-step accumulator path (3 tiles per core)
    loss_small = jax.block_until_ready(
        encoder_decoder_forward(x, w1, b1, w2, b2, batch, counts, wc, bc, y_onehot,
                                tile_n=128))
    assert jnp.allclose(loss_small, ref, rtol=5e-3, atol=5e-3), (loss_small, ref)

    # TODO(synk): decode2 / MaskBatch temporal decoder path is unused by forward(); not implemented.
    print("KERNEL_OK")
</pallas_src>

<mosaic_0001>
module attributes {stable_mosaic.version = 11 : i64} {
  func.func @classify_loss_kernel(%arg0: memref<2x8x128xf32, #tpu.memory_space<vmem>>, %arg1: memref<8x1xf32, #tpu.memory_space<vmem>>, %arg2: memref<1x128xf32, #tpu.memory_space<vmem>>, %arg3: memref<128x8xf32, #tpu.memory_space<vmem>>, %arg4: memref<1x8xf32, #tpu.memory_space<vmem>>, %arg5: memref<8x8xf32, #tpu.memory_space<vmem>>, %arg6: memref<1x1xf32, #tpu.memory_space<smem>>) attributes {dimension_semantics = [], scalar_prefetch = 0 : i64, scratch_operands = 0 : i64, tpu.core_type = #tpu.core_type<tc>} {
    %c0 = arith.constant 0 : index
    %c0_0 = arith.constant 0 : index
    %c0_1 = arith.constant 0 : index
    %0 = vector.load %arg0[%c0, %c0_0, %c0_1] : memref<2x8x128xf32, #tpu.memory_space<vmem>>, vector<2x8x128xf32>
    %cst = arith.constant dense<0.000000e+00> : vector<8x128xf32>
    %1 = vector.multi_reduction <add>, %0, %cst [0] : vector<2x8x128xf32> to vector<8x128xf32>
    %c0_2 = arith.constant 0 : index
    %c0_3 = arith.constant 0 : index
    %2 = vector.load %arg1[%c0_2, %c0_3] : memref<8x1xf32, #tpu.memory_space<vmem>>, vector<8x1xf32>
    %3 = vector.broadcast %2 : vector<8x1xf32> to vector<8x128xf32>
    %4 = arith.mulf %1, %3 : vector<8x128xf32>
    %c0_4 = arith.constant 0 : index
    %c0_5 = arith.constant 0 : index
    %5 = vector.load %arg2[%c0_4, %c0_5] : memref<1x128xf32, #tpu.memory_space<vmem>>, vector<1x128xf32>
    %6 = vector.broadcast %5 : vector<1x128xf32> to vector<8x128xf32>
    %7 = arith.addf %4, %6 : vector<8x128xf32>
    %c0_6 = arith.constant 0 : index
    %c0_7 = arith.constant 0 : index
    %8 = vector.load %arg3[%c0_6, %c0_7] : memref<128x8xf32, #tpu.memory_space<vmem>>, vector<128x8xf32>
    %cst_8 = arith.constant dense<0.000000e+00> : vector<8x8xf32>
    %9 = tpu.matmul %7, %8, %cst_8 {dimension_numbers = #tpu.dot_dimension_numbers<[1], [0], [0], [1], [0, 0, 1, 1], [], []>} : vector<8x128xf32>, vector<128x8xf32>, vector<8x8xf32> -> vector<8x8xf32>
    %c0_9 = arith.constant 0 : index
    %c0_10 = arith.constant 0 : index
    %10 = vector.load %arg4[%c0_9, %c0_10] : memref<1x8xf32, #tpu.memory_space<vmem>>, vector<1x8xf32>
    %11 = vector.broadcast %10 : vector<1x8xf32> to vector<8x8xf32>
    %12 = arith.addf %9, %11 : vector<8x8xf32>
    %cst_11 = arith.constant dense<0xFF800000> : vector<8xf32>
    %13 = vector.multi_reduction <maximumf>, %12, %cst_11 [1] : vector<8x8xf32> to vector<8xf32>
    %14 = vector.shape_cast %13 : vector<8xf32> to vector<8x1xf32>
    %15 = vector.broadcast %14 : vector<8x1xf32> to vector<8x8xf32>
    %16 = arith.subf %12, %15 : vector<8x8xf32>
    %17 = math.exp %16 : vector<8x8xf32>
    %cst_12 = arith.constant dense<0.000000e+00> : vector<8xf32>
    %18 = vector.multi_reduction <add>, %17, %cst_12 [1] : vector<8x8xf32> to vector<8xf32>
    %19 = vector.shape_cast %18 : vector<8xf32> to vector<8x1xf32>
    %20 = math.log %19 : vector<8x1xf32>
    %21 = vector.broadcast %20 : vector<8x1xf32> to vector<8x8xf32>
    %22 = arith.subf %16, %21 : vector<8x8xf32>
    %c0_13 = arith.constant 0 : index
    %c0_14 = arith.constant 0 : index
    %23 = vector.load %arg5[%c0_13, %c0_14] : memref<8x8xf32, #tpu.memory_space<vmem>>, vector<8x8xf32>
    %24 = arith.mulf %23, %22 : vector<8x8xf32>
    %cst_15 = arith.constant dense<0.000000e+00> : vector<8xf32>
    %25 = vector.multi_reduction <add>, %24, %cst_15 [1] : vector<8x8xf32> to vector<8xf32>
    %26 = vector.shape_cast %25 : vector<8xf32> to vector<8x1xf32>
    %cst_16 = arith.constant 0.000000e+00 : f32
    %27 = vector.broadcast %cst_16 : f32 to vector<8x1xf32>
    %28 = arith.subf %27, %26 : vector<8x1xf32>
    %29 = vector.shape_cast %28 : vector<8x1xf32> to vector<1x8x1xf32>
    %cst_17 = arith.constant dense<0.000000e+00> : vector<1xf32>
    %30 = vector.multi_reduction <add>, %29, %cst_17 [1, 2] : vector<1x8x1xf32> to vector<1xf32>
    %31 = vector.shape_cast %30 : vector<1xf32> to vector<1x1x1xf32>
    %32 = vector.extract %31[0, 0, 0] : f32 from vector<1x1x1xf32>
    %cst_18 = arith.constant 1.250000e-01 : f32
    %33 = arith.mulf %32, %cst_18 : f32
    %c0_19 = arith.constant 0 : index
    %c0_20 = arith.constant 0 : index
    %34 = memref.load %arg6[%c0_19, %c0_20] : memref<1x1xf32, #tpu.memory_space<smem>>
    memref.store %33, %arg6[%c0_19, %c0_20] : memref<1x1xf32, #tpu.memory_space<smem>>
    return
  }
}

module attributes {stable_mosaic.version = 11 : i64} {
  func.func @encode_pool_kernel(%arg0: i32, %arg1: i32, %arg2: memref<1x384xi32, #tpu.memory_space<vmem>>, %arg3: memref<384x128xbf16, #tpu.memory_space<vmem>>, %arg4: memref<128x128xbf16, #tpu.memory_space<vmem>>, %arg5: memref<1x128xf32, #tpu.memory_space<vmem>>, %arg6: memref<128x128xbf16, #tpu.memory_space<vmem>>, %arg7: memref<1x8x128xf32, #tpu.memory_space<vmem>>) attributes {dimension_semantics = [#tpu.dimension_semantics<parallel>, #tpu.dimension_semantics<arbitrary>], iteration_bounds = array<i64: 2, 1>, scalar_prefetch = 0 : i64, scratch_operands = 0 : i64, tpu.core_type = #tpu.core_type<tc>, window_params = [{transform_indices = @transform_0, window_bounds = array<i64: 1, 384>}, {transform_indices = @transform_1, window_bounds = array<i64: 384, 128>}, {pipeline_mode = #tpu.pipeline_mode<synchronous>, transform_indices = @transform_2, window_bounds = array<i64: 128, 128>}, {pipeline_mode = #tpu.pipeline_mode<synchronous>, transform_indices = @transform_3, window_bounds = array<i64: 1, 128>}, {pipeline_mode = #tpu.pipeline_mode<synchronous>, transform_indices = @transform_4, window_bounds = array<i64: 128, 128>}, {transform_indices = @transform_5, window_bounds = array<i64: 1, 8, 128>}]} {
    %c0_i32 = arith.constant 0 : i32
    %0 = arith.cmpi eq, %arg1, %c0_i32 : i32
    %1 = arith.extui %0 : i1 to i32
    %c0_i32_0 = arith.constant 0 : i32
    %2 = arith.cmpi ne, %1, %c0_i32_0 : i32
    scf.if %2 {
      %cst_19 = arith.constant 0.000000e+00 : f32
      %29 = vector.broadcast %cst_19 : f32 to vector<8x128xf32>
      %c0_20 = arith.constant 0 : index
      %c0_21 = arith.constant 0 : index
      %c0_22 = arith.constant 0 : index
      %30 = vector.load %arg7[%c0_20, %c0_21, %c0_22] : memref<1x8x128xf32, #tpu.memory_space<vmem>>, vector<1x8x128xf32>
      %31 = vector.shape_cast %30 : vector<1x8x128xf32> to vector<8x128xf32>
      %32 = vector.shape_cast %29 : vector<8x128xf32> to vector<1x8x128xf32>
      tpu.vector_store %arg7[%c0_20, %c0_21, %c0_22], %32 {strides = array<i32>} : memref<1x8x128xf32, #tpu.memory_space<vmem>>, vector<1x8x128xf32>,
    } else {
    }
    %c0 = arith.constant 0 : index
    %c0_1 = arith.constant 0 : index
    %3 = vector.load %arg3[%c0, %c0_1] : memref<384x128xbf16, #tpu.memory_space<vmem>>, vector<384x128xbf16>
    %c0_2 = arith.constant 0 : index
    %c0_3 = arith.constant 0 : index
    %4 = vector.load %arg4[%c0_2, %c0_3] : memref<128x128xbf16, #tpu.memory_space<vmem>>, vector<128x128xbf16>
    %cst = arith.constant dense<0.000000e+00> : vector<384x128xf32>
    %5 = tpu.matmul %3, %4, %cst {dimension_numbers = #tpu.dot_dimension_numbers<[1], [0], [0], [1], [0, 0, 1, 1], [], []>} : vector<384x128xbf16>, vector<128x128xbf16>, vector<384x128xf32> -> vector<384x128xf32>
    %c0_4 = arith.constant 0 : index
    %c0_5 = arith.constant 0 : index
    %6 = vector.load %arg5[%c0_4, %c0_5] : memref<1x128xf32, #tpu.memory_space<vmem>>, vector<1x128xf32>
    %7 = vector.broadcast %6 : vector<1x128xf32> to vector<384x128xf32>
    %8 = arith.addf %5, %7 : vector<384x128xf32>
    %cst_6 = arith.constant 0.000000e+00 : f32
    %9 = vector.broadcast %cst_6 : f32 to vector<384x128xf32>
    %10 = arith.maximumf %8, %9 : vector<384x128xf32>
    %11 = arith.truncf %10 : vector<384x128xf32> to vector<384x128xbf16>
    %c0_7 = arith.constant 0 : index
    %c0_8 = arith.constant 0 : index
    %12 = vector.load %arg6[%c0_7, %c0_8] : memref<128x128xbf16, #tpu.memory_space<vmem>>, vector<128x128xbf16>
    %cst_9 = arith.constant dense<0.000000e+00> : vector<384x128xf32>
    %13 = tpu.matmul %11, %12, %cst_9 {dimension_numbers = #tpu.dot_dimension_numbers<[1], [0], [0], [1], [0, 0, 1, 1], [], []>} : vector<384x128xbf16>, vector<128x128xbf16>, vector<384x128xf32> -> vector<384x128xf32>
    %14 = tpu.iota {dimensions = array<i32: 0>} : vector<8x384xi32>
    %c0_10 = arith.constant 0 : index
    %c0_11 = arith.constant 0 : index
    %15 = vector.load %arg2[%c0_10, %c0_11] : memref<1x384xi32, #tpu.memory_space<vmem>>, vector<1x384xi32>
    %16 = vector.broadcast %15 : vector<1x384xi32> to vector<8x384xi32>
    %17 = arith.cmpi eq, %16, %14 : vector<8x384xi32>
    %18 = arith.extui %17 : vector<8x384xi1> to vector<8x384xi32>
    %19 = arith.sitofp %18 : vector<8x384xi32> to vector<8x384xf32>
    %20 = arith.truncf %19 : vector<8x384xf32> to vector<8x384xbf16>
    %c0_12 = arith.constant 0 : index
    %c0_13 = arith.constant 0 : index
    %c0_14 = arith.constant 0 : index
    %21 = vector.load %arg7[%c0_12, %c0_13, %c0_14] : memref<1x8x128xf32, #tpu.memory_space<vmem>>, vector<1x8x128xf32>
    %22 = vector.shape_cast %21 : vector<1x8x128xf32> to vector<8x128xf32>
    %23 = arith.truncf %13 : vector<384x128xf32> to vector<384x128xbf16>
    %cst_15 = arith.constant dense<0.000000e+00> : vector<8x128xf32>
    %24 = tpu.matmul %20, %23, %cst_15 {dimension_numbers = #tpu.dot_dimension_numbers<[1], [0], [0], [1], [0, 0, 1, 1], [], []>} : vector<8x384xbf16>, vector<384x128xbf16>, vector<8x128xf32> -> vector<8x128xf32>
    %25 = arith.addf %22, %24 : vector<8x128xf32>
    %c0_16 = arith.constant 0 : index
    %c0_17 = arith.constant 0 : index
    %c0_18 = arith.constant 0 : index
    %26 = vector.load %arg7[%c0_16, %c0_17, %c0_18] : memref<1x8x128xf32, #tpu.memory_space<vmem>>, vector<1x8x128xf32>
    %27 = vector.shape_cast %26 : vector<1x8x128xf32> to vector<8x128xf32>
    %28 = vector.shape_cast %25 : vector<8x128xf32> to vector<1x8x128xf32>
    tpu.vector_store %arg7[%c0_16, %c0_17, %c0_18], %28 {strides = array<i32>} : memref<1x8x128xf32, #tpu.memory_space<vmem>>, vector<1x8x128xf32>,
    return
  }
  func.func @transform_0(%arg0: i32, %arg1: i32) -> (i32, i32) {
    %c1_i32 = arith.constant 1 : i32
    %0 = arith.muli %arg0, %c1_i32 : i32
    %1 = arith.addi %0, %arg1 : i32
    %c0_i32 = arith.constant 0 : i32
    %c0_i32_0 = arith.constant 0 : i32
    return %c0_i32, %1 : i32, i32
  }
  func.func @transform_1(%arg0: i32, %arg1: i32) -> (i32, i32) {
    %c1_i32 = arith.constant 1 : i32
    %0 = arith.muli %arg0, %c1_i32 : i32
    %1 = arith.addi %0, %arg1 : i32
    %c0_i32 = arith.constant 0 : i32
    %c0_i32_0 = arith.constant 0 : i32
    return %1, %c0_i32 : i32, i32
  }
  func.func @transform_2(%arg0: i32, %arg1: i32) -> (i32, i32) {
    %c0_i32 = arith.constant 0 : i32
    %c0_i32_0 = arith.constant 0 : i32
    %c0_i32_1 = arith.constant 0 : i32
    return %c0_i32, %c0_i32_0 : i32, i32
  }
  func.func @transform_3(%arg0: i32, %arg1: i32) -> (i32, i32) {
    %c0_i32 = arith.constant 0 : i32
    %c0_i32_0 = arith.constant 0 : i32
    %c0_i32_1 = arith.constant 0 : i32
    return %c0_i32, %c0_i32_0 : i32, i32
  }
  func.func @transform_4(%arg0: i32, %arg1: i32) -> (i32, i32) {
    %c0_i32 = arith.constant 0 : i32
    %c0_i32_0 = arith.constant 0 : i32
    %c0_i32_1 = arith.constant 0 : i32
    return %c0_i32, %c0_i32_0 : i32, i32
  }
  func.func @transform_5(%arg0: i32, %arg1: i32) -> (i32, i32, i32) {
    %c0_i32 = arith.constant 0 : i32
    %c0_i32_0 = arith.constant 0 : i32
    %c0_i32_1 = arith.constant 0 : i32
    return %arg0, %c0_i32, %c0_i32_0 : i32, i32, i32
  }
}

</mosaic_0001>

<llo_original>
// kernel: encoder_decoder_forward.3
$region0: #{encoder_decoder_forward.3}
  #allocation0 [shape = 'u32[]', space=smem, size = 0x4, offset = 0x4, fixed_abs, tag = 'smem constant byte address 0x4 - core index']
  #allocation1 [shape = 'u32[144,128]{1,0:T(1,128)}', space=vmem, size = 0x12000, scoped, tag = 'internal scratch']
  %s0 = inlined_call_operand.vmem [shape: f32[2,8,128], index: 0, kind: input, shape index: {}]
  %s1 = inlined_call_operand.vmem [shape: f32[8,1], index: 1, kind: input, shape index: {}]
  %s2 = inlined_call_operand.vmem [shape: f32[1,128], index: 2, kind: input, shape index: {}]
  %s3 = inlined_call_operand.vmem [shape: f32[128,8], index: 3, kind: input, shape index: {}]
  %s4 = inlined_call_operand.vmem [shape: f32[1,8], index: 4, kind: input, shape index: {}]
  %s5 = inlined_call_operand.vmem [shape: f32[8,8], index: 5, kind: input, shape index: {}]
  %s6 = inlined_call_operand.hbm [shape: f32[1,1], index: 6, kind: output, shape index: {}]
  %s7 = sld [smem:[#allocation0]]
  $region34: #{encoder_decoder_forward.3} parent=0
    _
  %s9 = ssub.s32 1, %s7
  %s10 = scalar_select 0, %s9, %s7
  $region1: #{encoder_decoder_forward.3} parent=0
    #allocation2 [shape = 'u8[512]{0}', space=smem, size = 0x200, scoped, tag = 'output window, operand 0, single buffered']
    #allocation3 [shape = 's32[1]{0}', space=sflag, size = 0x4, scoped, tag = 'scoped memory for encoder_decoder_forward.3']
    %11 = vsyncpa [#allocation3], 0
    // Predicated region
    $region2: #{encoder_decoder_forward.3} parent=1 // pred_check
      _
    $region3: #{encoder_decoder_forward.3} parent=1 // pred_check_branch
      %13 = sbr.rel (0) target = $region5
    $region4: #{encoder_decoder_forward.3} parent=1 // pred_region
      _
    $region5: #{encoder_decoder_forward.3} parent=1 // pred_fallthru
      _
    // Predicated region
    $region6: #{encoder_decoder_forward.3} parent=1 // pred_check
      _
    $region7: #{encoder_decoder_forward.3} parent=1 // pred_check_branch
      %15 = sbr.rel (0) target = $region9
    $region8: #{encoder_decoder_forward.3} parent=1 // pred_region
      _
    $region9: #{encoder_decoder_forward.3} parent=1 // pred_fallthru
      _
    // Predicated region
    $region10: #{encoder_decoder_forward.3} parent=1 // pred_check
      _
    $region11: #{encoder_decoder_forward.3} parent=1 // pred_check_branch
      %17 = sbr.rel (0) target = $region13
    $region12: #{encoder_decoder_forward.3} parent=1 // pred_region
      _
    $region13: #{encoder_decoder_forward.3} parent=1 // pred_fallthru
      _
    // Predicated region
    $region14: #{encoder_decoder_forward.3} parent=1 // pred_check
      _
    $region15: #{encoder_decoder_forward.3} parent=1 // pred_check_branch
      %19 = sbr.rel (0) target = $region17
    $region16: #{encoder_decoder_forward.3} parent=1 // pred_region
      _
    $region17: #{encoder_decoder_forward.3} parent=1 // pred_fallthru
      _
    // Predicated region
    $region18: #{encoder_decoder_forward.3} parent=1 // pred_check
      _
    $region19: #{encoder_decoder_forward.3} parent=1 // pred_check_branch
      %21 = sbr.rel (0) target = $region21
    $region20: #{encoder_decoder_forward.3} parent=1 // pred_region
      _
    $region21: #{encoder_decoder_forward.3} parent=1 // pred_fallthru
      _
    // Predicated region
    $region22: #{encoder_decoder_forward.3} parent=1 // pred_check
      _
    $region23: #{encoder_decoder_forward.3} parent=1 // pred_check_branch
      %23 = sbr.rel (0) target = $region25
    $region24: #{encoder_decoder_forward.3} parent=1 // pred_region
      _
    $region25: #{encoder_decoder_forward.3} parent=1 // pred_fallthru
      _
    %v24 = vld [vmem:[%s0] sm:$0xff]
    %v25 = vld [vmem:[%s0 + $0x8] sm:$0xff]
    %v26 = vadd.f32 %v24, %v25
    %v27 = vld [vmem:[%s1] sm:$0xff]
    %29 = vset.pattern.permute.xlu0 0
    %30 = vperm.xlu0 %29, %v27
    %v31 = vpop.permute.xlu0 %30
    %v33 = vmul.f32 %v26, %v31
    %v34 = vld [vmem:[%s2] sm:$0x1]
    %v36 = vlaneseq
    %v37 = vshrl.u32 %v36, 7
    %v38 = vsub.s32 0, %v37
    %v39 = vrot.slane %v34, %v38
    %v41 = vadd.f32 %v33, %v39
    %v42 = vld [vmem:[%s3] sm:$0xff]
    %v43 = vld [vmem:[%s3 + $0x8] sm:$0xff]
    %v44 = vld [vmem:[%s3 + $0x10] sm:$0xff]
    %v45 = vld [vmem:[%s3 + $0x18] sm:$0xff]
    %v46 = vld [vmem:[%s3 + $0x20] sm:$0xff]
    %v47 = vld [vmem:[%s3 + $0x28] sm:$0xff]
    %v48 = vld [vmem:[%s3 + $0x30] sm:$0xff]
    %v49 = vld [vmem:[%s3 + $0x38] sm:$0xff]
    %v50 = vld [vmem:[%s3 + $0x40] sm:$0xff]
    %v51 = vld [vmem:[%s3 + $0x48] sm:$0xff]
    %v52 = vld [vmem:[%s3 + $0x50] sm:$0xff]
    %v53 = vld [vmem:[%s3 + $0x58] sm:$0xff]
    %v54 = vld [vmem:[%s3 + $0x60] sm:$0xff]
    %v55 = vld [vmem:[%s3 + $0x68] sm:$0xff]
    %v56 = vld [vmem:[%s3 + $0x70] sm:$0xff]
    %v57 = vld [vmem:[%s3 + $0x78] sm:$0xff]
    %v58 = vld [vmem:[%s4] sm:$0x1]
    %v60 = vlaneseq
    %v61 = vshrl.u32 %v60, 7
    %v62 = vsub.s32 0, %v61
    %v63 = vrot.slane %v58, %v62
    %65 = vmatprep.subr.mxu0 0.0
    %66 = vmatpush1.msra.mxu0 %v57
    %67 = vmatprep.subr.mxu0 0.0
    %68 = vmatpush1.msra.mxu0 %v56
    %69 = vmatprep.subr.mxu0 0.0
    %70 = vmatpush1.msra.mxu0 %v55
    %71 = vmatprep.subr.mxu0 0.0
    %72 = vmatpush1.msra.mxu0 %v54
    %73 = vmatprep.subr.mxu0 0.0
    %74 = vmatpush1.msra.mxu0 %v53
    %75 = vmatprep.subr.mxu0 0.0
    %76 = vmatpush1.msra.mxu0 %v52
    %77 = vmatprep.subr.mxu0 0.0
    %78 = vmatpush1.msra.mxu0 %v51
    %79 = vmatprep.subr.mxu0 0.0
    %80 = vmatpush1.msra.mxu0 %v50
    %81 = vmatprep.subr.mxu0 0.0
    %82 = vmatpush1.msra.mxu0 %v49
    %83 = vmatprep.subr.mxu0 0.0
    %84 = vmatpush1.msra.mxu0 %v48
    %85 = vmatprep.subr.mxu0 0.0
    %86 = vmatpush1.msra.mxu0 %v47
    %87 = vmatprep.subr.mxu0 0.0
    %88 = vmatpush1.msra.mxu0 %v46
    %89 = vmatprep.subr.mxu0 0.0
    %90 = vmatpush1.msra.mxu0 %v45
    %91 = vmatprep.subr.mxu0 0.0
    %92 = vmatpush1.msra.mxu0 %v44
    %93 = vmatprep.subr.mxu0 0.0
    %94 = vmatpush1.msra.mxu0 %v43
    %95 = vmatprep.subr.mxu0 0.0
    %96 = vmatpush1.msra.mxu0 %v42
    %97 = vmatprep.subr.mxu0 0.0
    %98 = vmatpush2.msra.mxu0 0.0
    %99 = vmatprep.subr.mxu0 0.0
    %100 = vmatpush2.msra.mxu0 0.0
    %101 = vmatprep.subr.mxu0 0.0
    %102 = vmatpush2.msra.mxu0 0.0
    %103 = vmatprep.subr.mxu0 0.0
    %104 = vmatpush2.msra.mxu0 0.0
    %105 = vmatprep.subr.mxu0 0.0
    %106 = vmatpush2.msra.mxu0 0.0
    %107 = vmatprep.subr.mxu0 0.0
    %108 = vmatpush2.msra.mxu0 0.0
    %109 = vmatprep.subr.mxu0 0.0
    %110 = vmatpush2.msra.mxu0 0.0
    %111 = vmatprep.subr.mxu0 0.0
    %112 = vmatpush2.msra.mxu0 0.0
    %113 = vmatprep.subr.mxu0 0.0
    %114 = vmatpush2.msra.mxu0 0.0
    %115 = vmatprep.subr.mxu0 0.0
    %116 = vmatpush2.msra.mxu0 0.0
    %117 = vmatprep.subr.mxu0 0.0
    %118 = vmatpush2.msra.mxu0 0.0
    %119 = vmatprep.subr.mxu0 0.0
    %120 = vmatpush2.msra.mxu0 0.0
    %121 = vmatprep.subr.mxu0 0.0
    %122 = vmatpush2.msra.mxu0 0.0
    %123 = vmatprep.subr.mxu0 0.0
    %124 = vmatpush2.msra.mxu0 0.0
    %125 = vmatprep.subr.mxu0 0.0
    %126 = vmatpush2.msra.mxu0 0.0
    %127 = vmatprep.subr.mxu0 0.0
    %128 = vmatpush2.msra.mxu0 0.0
    %129 = vmatprep.mubr.f32.mxu0 0.0
    %130 = vmatmul.mubr.f32.gmra.mxu0 %v41
    %v131 = vpop.f32.mrf.mxu0
    %v132 = vadd.f32 %v63, %v131
    %v133 = vpop.f32.mrf.mxu0
    %134 = vdwg.mxu0
    %vm135 = vcmask 64512
    %v136 = vsel %vm135, %v132, -inf
    %137 = vmax.xlane.f32.xlu0 %v136
    %v138 = vpop.xlane.xlu0 %137
    %v139 = vsub.f32 %v132, %v138
    %v140 = vmul.f32 %v139, 1.442695
    %v141 = vpow.pop %v140
    %v142 = vsel %vm135, %v141, 0.0
    %143 = vadd.xlane.f32.xlu0 %v142
    %v144 = vpop.xlane.xlu0 %143
    %v145 = vlog2.pop %v144
    %v146 = vmul.f32 %v145, 0.6931472
    %v147 = vsub.f32 %v139, %v146
    %v148 = vld [vmem:[%s5] sm:$0xff]
    %v149 = vmul.f32 %v148, %v147
    %v150 = vsel %vm135, %v149, 0.0
    %151 = vadd.xlane.f32.xlu0 %v150
    %v152 = vpop.xlane.xlu0 %151
    %v153 = vsub.f32 0.0, %v152
    %vm154 = vcmask 7168
    %v155 = vsel %vm154, %v153, 0.0
    %156 = vadd.xlane.f32.xlu0 %v155
    %v157 = vpop.xlane.xlu0 %156
    %v158 = vrot.slane %v157, 4
    %v159 = vadd.f32 %v157, %v158
    %v160 = vrot.slane %v159, 2
    %v161 = vadd.f32 %v159, %v160
    %v162 = vrot.slane %v161, 1
    %v163 = vadd.f32 %v161, %v162
    %s164 = vtos %v163
    %s165 = smul.f32 %s164, 0.125
    %s166 = scalar_lea.smem [#allocation2], 0
    %167 = sst [smem:[%s166]] %s165
    // Predicated region
    $region26: #{encoder_decoder_forward.3} parent=1 // pred_check
      _
    $region27: #{encoder_decoder_forward.3} parent=1 // pred_check_branch
      %169 = sbr.rel (0) target = $region29
    $region28: #{encoder_decoder_forward.3} parent=1 // pred_region
      %s171 = ssub.s32 16, 16
      %172 = vsyncadd [#allocation3], %s171
      %175 = dma.smem_to_hbm [#allocation2], 16, %s6, [#allocation3]
    $region29: #{encoder_decoder_forward.3} parent=1 // pred_fallthru
      _
    // Predicated region
    $region30: #{encoder_decoder_forward.3} parent=1 // pred_check
      _
    $region31: #{encoder_decoder_forward.3} parent=1 // pred_check_branch
      %177 = sbr.rel (0) target = $region33
    $region32: #{encoder_decoder_forward.3} parent=1 // pred_region
      %178 = dma.done [#allocation3], 16
    $region33: #{encoder_decoder_forward.3} parent=1 // pred_fallthru
      _
    %179 = sfence
    %180 = vsyncpa [#allocation3], 1

// kernel: encoder_decoder_forward.2
$region0: #{encoder_decoder_forward.2}
  #allocation0 [shape = 'u32[]', space=smem, size = 0x4, offset = 0x4, fixed_abs, tag = 'smem constant byte address 0x4 - core index']
  #allocation1 [shape = 'u32[144,128]{1,0:T(1,128)}', space=vmem, size = 0x12000, scoped, tag = 'internal scratch']
  %s0 = inlined_call_operand.vmem [shape: s32[1,768], index: 0, kind: input, shape index: {}]
  %s1 = inlined_call_operand.vmem [shape: bf16[768,128], index: 1, kind: input, shape index: {}]
  %s2 = inlined_call_operand.vmem [shape: bf16[128,128], index: 2, kind: input, shape index: {}]
  %s3 = inlined_call_operand.vmem [shape: f32[1,128], index: 3, kind: input, shape index: {}]
  %s4 = inlined_call_operand.vmem [shape: bf16[128,128], index: 4, kind: input, shape index: {}]
  %s5 = inlined_call_operand.vmem [shape: f32[2,8,128], index: 5, kind: output, shape index: {}]
  %s6 = sld [smem:[#allocation0]]
  $region57: #{encoder_decoder_forward.2} parent=0
    _
  %s8 = ssub.s32 1, %s6
  %s9 = scalar_select 0, %s8, %s6
  loop: start=0, step=1, limit=4
  $region2: #{encoder_decoder_forward.2} parent=0 // loop_pre_header
    _
  $region3: #{encoder_decoder_forward.2} parent=0 // loop_header
    %s11 = sphi 0, %s15
    %p12 = scmp.ge.s32.totalorder %s11, 4
    %s18 = sphi 0, %s30
    %s19 = sphi 0, %s26
    %s20 = sphi 0, %s18
    %s21 = sphi 0, %s19
    %s22 = sphi 0, %s20
    %s23 = sphi 0, %s21
    %s35 = sphi 0, %s37
    %s38 = sphi 0, %s35
    %s39 = sphi 0, %s38
    %s55 = sphi 0, %s39
    %s63 = sphi 0, %s65
    %s66 = sphi 0, %s63
    %s67 = sphi 0, %s66
    %s83 = sphi 0, %s67
    %s87 = sphi 0, %s87
    %s89 = sphi 0, %s87
    %s90 = sphi 0, %s89
    %s104 = sphi 0, %s90
    %s108 = sphi 0, %s108
    %s110 = sphi 0, %s108
    %s111 = sphi 0, %s110
    %s125 = sphi 0, %s111
    %s129 = sphi 0, %s129
    %s131 = sphi 0, %s129
    %s132 = sphi 0, %s131
    %s146 = sphi 0, %s132
    %s152 = sphi 0, %s154
    %s155 = sphi 0, %s152
    %s156 = sphi 0, %s155
    %s172 = sphi 0, %s156
  $region4: #{encoder_decoder_forward.2} parent=0 // loop_header_branch
    %14 = sbr.rel (%p12) target = $region8
  $region5: #{encoder_decoder_forward.2} parent=0 // loop_body
    %s16 = ssub.s32 %s11, 1
    %s17 = ssub.s32 %s11, 2
    %s24 = sadd.s32 1, %s19
    %p25 = scmp.ge.s32.totalorder %s24, 1
    %s26 = scalar_select %p25, 0, %s24
    %s27 = sadd.s32 1, %s18
    %s28 = scalar_select %p25, %s27, %s18
    %p29 = scmp.ge.s32.totalorder %s28, 2
    %s30 = scalar_select %p29, 0, %s28
    %s31 = sadd.s32 %s18, %s19
    %s32 = sadd.s32 %s30, %s26
    %s33 = ssub.s32 %s31, %s32
    %p34 = scmp.eq.s32.totalorder %s33, 0
    %s36 = sadd.s32 %s35, 1
    %s37 = scalar_select %p34, %s35, %s36
    %p40 = pneg %p34
    %p41 = scmp.eq.s32.totalorder %s11, 1
    %p42 = por %p40, %p41
    %p43 = scmp.ne.s32.totalorder %s35, %s38
    %p44 = scmp.eq.s32.totalorder %s11, 0
    %p45 = por %p43, %p44
    %p46 = scmp.ne.s32.totalorder %s35, %s38
    %p47 = scmp.eq.s32.totalorder %s16, 1
    %p48 = por %p46, %p47
    %p49 = scmp.ne.s32.totalorder %s38, %s39
    %p50 = scmp.eq.s32.totalorder %s16, 0
    %p51 = por %p49, %p50
    %p52 = scmp.ne.s32.totalorder %s38, %s39
    %p53 = scmp.eq.s32.totalorder %s17, 1
    %p54 = por %p52, %p53
    %p56 = scmp.ne.s32.totalorder %s39, %s55
    %p57 = scmp.eq.s32.totalorder %s17, 0
    %p58 = por %p56, %p57
    %s59 = sadd.s32 %s18, %s19
    %s60 = sadd.s32 %s30, %s26
    %s61 = ssub.s32 %s59, %s60
    %p62 = scmp.eq.s32.totalorder %s61, 0
    %s64 = sadd.s32 %s63, 1
    %s65 = scalar_select %p62, %s63, %s64
    %p68 = pneg %p62
    %p69 = scmp.eq.s32.totalorder %s11, 1
    %p70 = por %p68, %p69
    %p71 = scmp.ne.s32.totalorder %s63, %s66
    %p72 = scmp.eq.s32.totalorder %s11, 0
    %p73 = por %p71, %p72
    %p74 = scmp.ne.s32.totalorder %s63, %s66
    %p75 = scmp.eq.s32.totalorder %s16, 1
    %p76 = por %p74, %p75
    %p77 = scmp.ne.s32.totalorder %s66, %s67
    %p78 = scmp.eq.s32.totalorder %s16, 0
    %p79 = por %p77, %p78
    %p80 = scmp.ne.s32.totalorder %s66, %s67
    %p81 = scmp.eq.s32.totalorder %s17, 1
    %p82 = por %p80, %p81
    %p84 = scmp.ne.s32.totalorder %s67, %s83
    %p85 = scmp.eq.s32.totalorder %s17, 0
    %p86 = por %p84, %p85
    %s88 = sadd.s32 %s87, 1
    %p91 = scmp.eq.s32.totalorder %s11, 1
    %p92 = scmp.ne.s32.totalorder %s87, %s89
    %p93 = scmp.eq.s32.totalorder %s11, 0
    %p94 = por %p92, %p93
    %p95 = scmp.ne.s32.totalorder %s87, %s89
    %p96 = scmp.eq.s32.totalorder %s16, 1
    %p97 = por %p95, %p96
    %p98 = scmp.ne.s32.totalorder %s89, %s90
    %p99 = scmp.eq.s32.totalorder %s16, 0
    %p100 = por %p98, %p99
    %p101 = scmp.ne.s32.totalorder %s89, %s90
    %p102 = scmp.eq.s32.totalorder %s17, 1
    %p103 = por %p101, %p102
    %p105 = scmp.ne.s32.totalorder %s90, %s104
    %p106 = scmp.eq.s32.totalorder %s17, 0
    %p107 = por %p105, %p106
    %s109 = sadd.s32 %s108, 1
    %p112 = scmp.eq.s32.totalorder %s11, 1
    %p113 = scmp.ne.s32.totalorder %s108, %s110
    %p114 = scmp.eq.s32.totalorder %s11, 0
    %p115 = por %p113, %p114
    %p116 = scmp.ne.s32.totalorder %s108, %s110
    %p117 = scmp.eq.s32.totalorder %s16, 1
    %p118 = por %p116, %p117
    %p119 = scmp.ne.s32.totalorder %s110, %s111
    %p120 = scmp.eq.s32.totalorder %s16, 0
    %p121 = por %p119, %p120
    %p122 = scmp.ne.s32.totalorder %s110, %s111
    %p123 = scmp.eq.s32.totalorder %s17, 1
    %p124 = por %p122, %p123
    %p126 = scmp.ne.s32.totalorder %s111, %s125
    %p127 = scmp.eq.s32.totalorder %s17, 0
    %p128 = por %p126, %p127
    %s130 = sadd.s32 %s129, 1
    %p133 = scmp.eq.s32.totalorder %s11, 1
    %p134 = scmp.ne.s32.totalorder %s129, %s131
    %p135 = scmp.eq.s32.totalorder %s11, 0
    %p136 = por %p134, %p135
    %p137 = scmp.ne.s32.totalorder %s129, %s131
    %p138 = scmp.eq.s32.totalorder %s16, 1
    %p139 = por %p137, %p138
    %p140 = scmp.ne.s32.totalorder %s131, %s132
    %p141 = scmp.eq.s32.totalorder %s16, 0
    %p142 = por %p140, %p141
    %p143 = scmp.ne.s32.totalorder %s131, %s132
    %p144 = scmp.eq.s32.totalorder %s17, 1
    %p145 = por %p143, %p144
    %p147 = scmp.ne.s32.totalorder %s132, %s146
    %p148 = scmp.eq.s32.totalorder %s17, 0
    %p149 = por %p147, %p148
    %s150 = ssub.s32 %s18, %s30
    %p151 = scmp.eq.s32.totalorder %s150, 0
    %s153 = sadd.s32 %s152, 1
    %s154 = scalar_select %p151, %s152, %s153
    %p157 = pneg %p151
    %p158 = scmp.eq.s32.totalorder %s11, 1
    %p159 = por %p157, %p158
    %p160 = scmp.ne.s32.totalorder %s152, %s155
    %p161 = scmp.eq.s32.totalorder %s11, 0
    %p162 = por %p160, %p161
    %p163 = scmp.ne.s32.totalorder %s152, %s155
    %p164 = scmp.eq.s32.totalorder %s16, 1
    %p165 = por %p163, %p164
    %p166 = scmp.ne.s32.totalorder %s155, %s156
    %p167 = scmp.eq.s32.totalorder %s16, 0
    %p168 = por %p166, %p167
    %p169 = scmp.ne.s32.totalorder %s155, %s156
    %p170 = scmp.eq.s32.totalorder %s17, 1
    %p171 = por %p169, %p170
    %p173 = scmp.ne.s32.totalorder %s156, %s172
    %p174 = scmp.eq.s32.totalorder %s17, 0
    %p175 = por %p173, %p174
    %p176 = scmp.le.s32.totalorder 1, %s11
    %p177 = scmp.lt.s32.totalorder %s11, 3
    %p178 = pnand %p176, %p177
    %p179 = pneg %p178
    // Predicated region
    $region9: #{encoder_decoder_forward.2} parent=5 // pred_check
      _
    $region10: #{encoder_decoder_forward.2} parent=5 // pred_check_branch
      %181 = sbr.rel (%p178) target = $region12
    $region11: #{encoder_decoder_forward.2} parent=5 // pred_region
      %s182 = ssub.s32 %s11, 1
      // Predicated region
      $region13: #{encoder_decoder_forward.2} parent=11 // pred_check
        %p183 = pneg %p100
      $region14: #{encoder_decoder_forward.2} parent=11 // pred_check_branch
        %185 = sbr.rel (%p183) target = $region16
      $region15: #{encoder_decoder_forward.2} parent=11 // pred_region
        _
      $region16: #{encoder_decoder_forward.2} parent=11 // pred_fallthru
        _
      // Predicated region
      $region17: #{encoder_decoder_forward.2} parent=11 // pred_check
        %p186 = pneg %p121
      $region18: #{encoder_decoder_forward.2} parent=11 // pred_check_branch
        %188 = sbr.rel (%p186) target = $region20
      $region19: #{encoder_decoder_forward.2} parent=11 // pred_region
        _
      $region20: #{encoder_decoder_forward.2} parent=11 // pred_fallthru
        _
      // Predicated region
      $region21: #{encoder_decoder_forward.2} parent=11 // pred_check
        %p189 = pneg %p142
      $region22: #{encoder_decoder_forward.2} parent=11 // pred_check_branch
        %191 = sbr.rel (%p189) target = $region24
      $region23: #{encoder_decoder_forward.2} parent=11 // pred_region
        _
      $region24: #{encoder_decoder_forward.2} parent=11 // pred_fallthru
        _
    $region12: #{encoder_decoder_forward.2} parent=5 // pred_fallthru
      _
    %p192 = scmp.lt.s32.totalorder %s11, 2
    // Predicated region
    $region25: #{encoder_decoder_forward.2} parent=5 // pred_check
      %p193 = pneg %p192
    $region26: #{encoder_decoder_forward.2} parent=5 // pred_check_branch
      %195 = sbr.rel (%p193) target = $region28
    $region27: #{encoder_decoder_forward.2} parent=5 // pred_region
      // Predicated region
      $region29: #{encoder_decoder_forward.2} parent=27 // pred_check
        %p196 = pneg %p45
      $region30: #{encoder_decoder_forward.2} parent=27 // pred_check_branch
        %198 = sbr.rel (%p196) target = $region32
      $region31: #{encoder_decoder_forward.2} parent=27 // pred_region
        %s199 = sadd.s32 %s18, %s19
        %s200 = smul.u32 3, %s199
        %p201 = scmp.lt.s32.totalorder %s200, 5
        %s202 = scalar_select %p201, %s200, 5
        %s203 = scalar_lea.vmem %s0, %s202
        %s204 = sadd.s32 %s18, %s19
        %s205 = smul.u32 3, %s204
      $region32: #{encoder_decoder_forward.2} parent=27 // pred_fallthru
        _
      // Predicated region
      $region33: #{encoder_decoder_forward.2} parent=27 // pred_check
        %p206 = pneg %p73
      $region34: #{encoder_decoder_forward.2} parent=27 // pred_check_branch
        %208 = sbr.rel (%p206) target = $region36
      $region35: #{encoder_decoder_forward.2} parent=27 // pred_region
        %s209 = sadd.s32 %s18, %s19
        %s210 = smul.u32 48, %s209
        %p211 = scmp.lt.s32.totalorder %s210, 95
        %s212 = scalar_select %p211, %s210, 95
        %s213 = smul.addr %s212, 4
        %s214 = scalar_lea.vmem %s1, %s213
        %s215 = sadd.s32 %s18, %s19
        %s216 = smul.u32 48, %s215
      $region36: #{encoder_decoder_forward.2} parent=27 // pred_fallthru
        _
    $region28: #{encoder_decoder_forward.2} parent=5 // pred_fallthru
      _
    %p217 = scmp.le.s32.totalorder 1, %s11
    %p218 = scmp.lt.s32.totalorder %s11, 3
    %p219 = pnand %p217, %p218
    %p220 = pneg %p219
    // Predicated region
    $region37: #{encoder_decoder_forward.2} parent=5 // pred_check
      _
    $region38: #{encoder_decoder_forward.2} parent=5 // pred_check_branch
      %222 = sbr.rel (%p219) target = $region40
    $region39: #{encoder_decoder_forward.2} parent=5 // pred_region
      %s223 = ssub.s32 %s11, 1
      %s224 = sadd.s32 %s20, %s21
      %s225 = smul.u32 3, %s224
      %p226 = scmp.lt.s32.totalorder %s225, 5
      %s227 = scalar_select %p226, %s225, 5
      %s228 = scalar_lea.vmem %s0, %s227
      %p229 = pneg %p51
      %p230 = pneg %p48
      %s231 = sadd.s32 %s20, %s21
      %s232 = smul.u32 48, %s231
      %p233 = scmp.lt.s32.totalorder %s232, 95
      %s234 = scalar_select %p233, %s232, 95
      %s235 = smul.addr %s234, 4
      %s236 = scalar_lea.vmem %s1, %s235
      %p237 = pneg %p79
      %p238 = pneg %p76
      %p239 = pneg %p100
      %p240 = pneg %p97
      %p241 = pneg %p121
      %p242 = pneg %p118
      %p243 = pneg %p142
      %p244 = pneg %p139
      %p245 = pneg %p168
      %p246 = pneg %p165
      %p247 = scmp.lt.s32.totalorder %s20, 1
      %s248 = scalar_select %p247, %s20, 1
      %s249 = smul.addr %s248, 8
      %s250 = scalar_lea.vmem %s5, %s249
      %s251 = sadd.s32 %s20, %s21
      %s252 = smul.u32 3, %s251
      %p253 = scmp.lt.s32.totalorder %s252, 5
      %s254 = scalar_select %p253, %s252, 5
      %s255 = scalar_lea.vmem %s0, %s254
      %s256 = sadd.s32 %s20, %s21
      %s257 = smul.u32 3, %s256
      %s258 = sadd.s32 %s20, %s21
      %s259 = smul.u32 48, %s258
      %p260 = scmp.lt.s32.totalorder %s259, 95
      %s261 = scalar_select %p260, %s259, 95
      %s262 = smul.addr %s261, 4
      %s263 = scalar_lea.vmem %s1, %s262
      %s264 = sadd.s32 %s20, %s21
      %s265 = smul.u32 48, %s264
      %p266 = scmp.lt.s32.totalorder %s20, 1
      %s267 = scalar_select %p266, %s20, 1
      %s268 = smul.addr %s267, 8
      %s269 = scalar_lea.vmem %s5, %s268
      %p271 = scmp.eq.s32.totalorder %s21, 0
      // Predicated region
      $region41: #{encoder_decoder_forward.2} parent=39 // pred_check
        %p272 = pneg %p271
      $region42: #{encoder_decoder_forward.2} parent=39 // pred_check_branch
        %274 = sbr.rel (%p272) target = $region44
      $region43: #{encoder_decoder_forward.2} parent=39 // pred_region
        %275 = vst [vmem:[%s269] sm:$0xff] 0.0
      $region44: #{encoder_decoder_forward.2} parent=39 // pred_fallthru
        _
      %v276 = vld [vmem:[%s263] sm:$0xf]
      %v277 = vld [vmem:[%s263 + $0x4] sm:$0xf]
      %v278 = vld [vmem:[%s263 + $0x8] sm:$0xf]
      %v279 = vld [vmem:[%s263 + $0xc] sm:$0xf]
      %v280 = vld [vmem:[%s263 + $0x10] sm:$0xf]
      %v281 = vld [vmem:[%s263 + $0x14] sm:$0xf]
      %v282 = vld [vmem:[%s263 + $0x18] sm:$0xf]
      %v283 = vld [vmem:[%s263 + $0x1c] sm:$0xf]
      %v284 = vld [vmem:[%s263 + $0x20] sm:$0xf]
      %v285 = vld [vmem:[%s263 + $0x24] sm:$0xf]
      %v286 = vld [vmem:[%s263 + $0x28] sm:$0xf]
      %v287 = vld [vmem:[%s263 + $0x2c] sm:$0xf]
      %v288 = vld [vmem:[%s263 + $0x30] sm:$0xf]
      %v289 = vld [vmem:[%s263 + $0x34] sm:$0xf]
      %v290 = vld [vmem:[%s263 + $0x38] sm:$0xf]
      %v291 = vld [vmem:[%s263 + $0x3c] sm:$0xf]
      %v292 = vld [vmem:[%s263 + $0x40] sm:$0xf]
      %v293 = vld [vmem:[%s263 + $0x44] sm:$0xf]
      %v294 = vld [vmem:[%s263 + $0x48] sm:$0xf]
      %v295 = vld [vmem:[%s263 + $0x4c] sm:$0xf]
      %v296 = vld [vmem:[%s263 + $0x50] sm:$0xf]
      %v297 = vld [vmem:[%s263 + $0x54] sm:$0xf]
      %v298 = vld [vmem:[%s263 + $0x58] sm:$0xf]
      %v299 = vld [vmem:[%s263 + $0x5c] sm:$0xf]
      %v300 = vld [vmem:[%s263 + $0x60] sm:$0xf]
      %v301 = vld [vmem:[%s263 + $0x64] sm:$0xf]
      %v302 = vld [vmem:[%s263 + $0x68] sm:$0xf]
      %v303 = vld [vmem:[%s263 + $0x6c] sm:$0xf]
      %v304 = vld [vmem:[%s263 + $0x70] sm:$0xf]
      %v305 = vld [vmem:[%s263 + $0x74] sm:$0xf]
      %v306 = vld [vmem:[%s263 + $0x78] sm:$0xf]
      %v307 = vld [vmem:[%s263 + $0x7c] sm:$0xf]
      %v308 = vld [vmem:[%s263 + $0x80] sm:$0xf]
      %v309 = vld [vmem:[%s263 + $0x84] sm:$0xf]
      %v310 = vld [vmem:[%s263 + $0x88] sm:$0xf]
      %v311 = vld [vmem:[%s263 + $0x8c] sm:$0xf]
      %v312 = vld [vmem:[%s263 + $0x90] sm:$0xf]
      %v313 = vld [vmem:[%s263 + $0x94] sm:$0xf]
      %v314 = vld [vmem:[%s263 + $0x98] sm:$0xf]
      %v315 = vld [vmem:[%s263 + $0x9c] sm:$0xf]
      %v316 = vld [vmem:[%s263 + $0xa0] sm:$0xf]
      %v317 = vld [vmem:[%s263 + $0xa4] sm:$0xf]
      %v318 = vld [vmem:[%s263 + $0xa8] sm:$0xf]
      %v319 = vld [vmem:[%s263 + $0xac] sm:$0xf]
      %v320 = vld [vmem:[%s263 + $0xb0] sm:$0xf]
      %v321 = vld [vmem:[%s263 + $0xb4] sm:$0xf]
      %v322 = vld [vmem:[%s263 + $0xb8] sm:$0xf]
      %v323 = vld [vmem:[%s263 + $0xbc] sm:$0xf]
      %v324 = vld [vmem:[%s2] sm:$0xf]
      %v325 = vld [vmem:[%s2 + $0x4] sm:$0xf]
      %v326 = vld [vmem:[%s2 + $0x8] sm:$0xf]
      %v327 = vld [vmem:[%s2 + $0xc] sm:$0xf]
      %v328 = vld [vmem:[%s2 + $0x10] sm:$0xf]
      %v329 = vld [vmem:[%s2 + $0x14] sm:$0xf]
      %v330 = vld [vmem:[%s2 + $0x18] sm:$0xf]
      %v331 = vld [vmem:[%s2 + $0x1c] sm:$0xf]
      %v332 = vld [vmem:[%s2 + $0x20] sm:$0xf]
      %v333 = vld [vmem:[%s2 + $0x24] sm:$0xf]
      %v334 = vld [vmem:[%s2 + $0x28] sm:$0xf]
      %v335 = vld [vmem:[%s2 + $0x2c] sm:$0xf]
      %v336 = vld [vmem:[%s2 + $0x30] sm:$0xf]
      %v337 = vld [vmem:[%s2 + $0x34] sm:$0xf]
      %v338 = vld [vmem:[%s2 + $0x38] sm:$0xf]
      %v339 = vld [vmem:[%s2 + $0x3c] sm:$0xf]
      %v340 = vld [vmem:[%s3] sm:$0x1]
      %v342 = vlaneseq
      %v343 = vshrl.u32 %v342, 7
      %v344 = vsub.s32 0, %v343
      %v345 = vrot.slane %v340, %v344
      %v395 = vunpack.c.l.b16 %v276
      %v396 = vunpack.c.l.b16 %v277
      %v397 = vunpack.c.l.b16 %v278
      %v398 = vunpack.c.l.b16 %v279
      %v399 = vunpack.c.l.b16 %v280
      %v400 = vunpack.c.l.b16 %v281
      %v401 = vunpack.c.l.b16 %v282
      %v402 = vunpack.c.l.b16 %v283
      %v403 = vunpack.c.l.b16 %v284
      %v404 = vunpack.c.l.b16 %v285
      %v405 = vunpack.c.l.b16 %v286
      %v406 = vunpack.c.l.b16 %v287
      %v407 = vunpack.c.l.b16 %v288
      %v408 = vunpack.c.l.b16 %v289
      %v409 = vunpack.c.l.b16 %v290
      %v410 = vunpack.c.l.b16 %v291
      %v411 = vunpack.c.l.b16 %v292
      %v412 = vunpack.c.l.b16 %v293
      %v413 = vunpack.c.l.b16 %v294
      %v414 = vunpack.c.l.b16 %v295
      %v415 = vunpack.c.l.b16 %v296
      %v416 = vunpack.c.l.b16 %v297
      %v417 = vunpack.c.l.b16 %v298
      %v418 = vunpack.c.l.b16 %v299
      %v419 = vunpack.c.l.b16 %v300
      %v420 = vunpack.c.l.b16 %v301
      %v421 = vunpack.c.l.b16 %v302
      %v422 = vunpack.c.l.b16 %v303
      %v423 = vunpack.c.l.b16 %v304
      %v424 = vunpack.c.l.b16 %v305
      %v425 = vunpack.c.l.b16 %v306
      %v426 = vunpack.c.l.b16 %v307
      %v427 = vunpack.c.l.b16 %v308
      %v428 = vunpack.c.l.b16 %v309
      %v429 = vunpack.c.l.b16 %v310
      %v430 = vunpack.c.l.b16 %v311
      %v431 = vunpack.c.l.b16 %v312
      %v432 = vunpack.c.l.b16 %v313
      %v433 = vunpack.c.l.b16 %v314
      %v434 = vunpack.c.l.b16 %v315
      %v435 = vunpack.c.l.b16 %v316
      %v436 = vunpack.c.l.b16 %v317
      %v437 = vunpack.c.l.b16 %v318
      %v438 = vunpack.c.l.b16 %v319
      %v439 = vunpack.c.l.b16 %v320
      %v440 = vunpack.c.l.b16 %v321
      %v441 = vunpack.c.l.b16 %v322
      %v442 = vunpack.c.l.b16 %v323
      %v443 = vpack.c.b16 %v396, %v395
      %v444 = vpack.c.b16 %v398, %v397
      %v445 = vpack.c.b16 %v400, %v399
      %v446 = vpack.c.b16 %v402, %v401
      %v447 = vpack.c.b16 %v404, %v403
      %v448 = vpack.c.b16 %v406, %v405
      %v449 = vpack.c.b16 %v408, %v407
      %v450 = vpack.c.b16 %v410, %v409
      %v451 = vpack.c.b16 %v412, %v411
      %v452 = vpack.c.b16 %v414, %v413
      %v453 = vpack.c.b16 %v416, %v415
      %v454 = vpack.c.b16 %v418, %v417
      %v455 = vpack.c.b16 %v420, %v419
      %v456 = vpack.c.b16 %v422, %v421
      %v457 = vpack.c.b16 %v424, %v423
      %v458 = vpack.c.b16 %v426, %v425
      %v459 = vpack.c.b16 %v428, %v427
      %v460 = vpack.c.b16 %v430, %v429
      %v461 = vpack.c.b16 %v432, %v431
      %v462 = vpack.c.b16 %v434, %v433
      %v463 = vpack.c.b16 %v436, %v435
      %v464 = vpack.c.b16 %v438, %v437
      %v465 = vpack.c.b16 %v440, %v439
      %v466 = vpack.c.b16 %v442, %v441
      %v507 = vunpack.c.l.b16 %v324
      %v508 = vunpack.c.l.b16 %v325
      %v509 = vunpack.c.l.b16 %v326
      %v510 = vunpack.c.l.b16 %v327
      %v511 = vunpack.c.l.b16 %v328
      %v512 = vunpack.c.l.b16 %v329
      %v513 = vunpack.c.l.b16 %v330
      %v514 = vunpack.c.l.b16 %v331
      %v515 = vunpack.c.l.b16 %v332
      %v516 = vunpack.c.l.b16 %v333
      %v517 = vunpack.c.l.b16 %v334
      %v518 = vunpack.c.l.b16 %v335
      %v519 = vunpack.c.l.b16 %v336
      %v520 = vunpack.c.l.b16 %v337
      %v521 = vunpack.c.l.b16 %v338
      %v522 = vunpack.c.l.b16 %v339
      %v523 = vpack.c.b16 %v508, %v507
      %v524 = vpack.c.b16 %v510, %v509
      %v525 = vpack.c.b16 %v512, %v511
      %v526 = vpack.c.b16 %v514, %v513
      %v527 = vpack.c.b16 %v516, %v515
      %v528 = vpack.c.b16 %v518, %v517
      %v529 = vpack.c.b16 %v520, %v519
      %v530 = vpack.c.b16 %v522, %v521
      %539 = vmatprep.subr.bf16.mxu0 0
      %540 = vmatpush1.bf16.msra.mxu0 %v530
      %541 = vmatprep.subr.bf16.mxu0 0
      %542 = vmatpush1.bf16.msra.mxu0 %v529
      %543 = vmatprep.subr.bf16.mxu0 0
      %544 = vmatpush1.bf16.msra.mxu0 %v528
      %545 = vmatprep.subr.bf16.mxu0 0
      %546 = vmatpush1.bf16.msra.mxu0 %v527
      %547 = vmatprep.subr.bf16.mxu0 0
      %548 = vmatpush1.bf16.msra.mxu0 %v526
      %549 = vmatprep.subr.bf16.mxu0 0
      %550 = vmatpush1.bf16.msra.mxu0 %v525
      %551 = vmatprep.subr.bf16.mxu0 0
      %552 = vmatpush1.bf16.msra.mxu0 %v524
      %553 = vmatprep.subr.bf16.mxu0 0
      %554 = vmatpush1.bf16.msra.mxu0 %v523
      %555 = vmatprep.subr.bf16.mxu0 0
      %556 = vmatpush2.bf16.msra.mxu0 0
      %557 = vmatprep.subr.bf16.mxu0 0
      %558 = vmatpush2.bf16.msra.mxu0 0
      %559 = vmatprep.subr.bf16.mxu0 0
      %560 = vmatpush2.bf16.msra.mxu0 0
      %561 = vmatprep.subr.bf16.mxu0 0
      %562 = vmatpush2.bf16.msra.mxu0 0
      %563 = vmatprep.subr.bf16.mxu0 0
      %564 = vmatpush2.bf16.msra.mxu0 0
      %565 = vmatprep.subr.bf16.mxu0 0
      %566 = vmatpush2.bf16.msra.mxu0 0
      %567 = vmatprep.subr.bf16.mxu0 0
      %568 = vmatpush2.bf16.msra.mxu0 0
      %569 = vmatprep.subr.bf16.mxu0 0
      %570 = vmatpush2.bf16.msra.mxu0 0
      %571 = vmatprep.mubr.bf16.mxu0 0
      %572 = vmatmul.mubr.bf16.gmra.mxu0 %v443
      %v573 = vpop.f32.mrf.mxu0
      %v574 = vadd.f32 %v345, %v573
      %v575 = vpop.f32.mrf.mxu0
      %v576 = vpop.f32.mrf.mxu0
      %v577 = vadd.f32 %v345, %v576
      %v578 = vpop.f32.mrf.mxu0
      %579 = vmatprep.mubr.bf16.mxu0 0
      %580 = vmatmul.mubr.bf16.gmra.mxu0 %v444
      %v581 = vpop.f32.mrf.mxu0
      %v582 = vadd.f32 %v345, %v581
      %v583 = vpop.f32.mrf.mxu0
      %v584 = vpop.f32.mrf.mxu0
      %v585 = vadd.f32 %v345, %v584
      %v586 = vpop.f32.mrf.mxu0
      %587 = vmatprep.mubr.bf16.mxu0 0
      %588 = vmatmul.mubr.bf16.gmra.mxu0 %v445
      %v589 = vpop.f32.mrf.mxu0
      %v590 = vadd.f32 %v345, %v589
      %v591 = vpop.f32.mrf.mxu0
      %v592 = vpop.f32.mrf.mxu0
      %v593 = vadd.f32 %v345, %v592
      %v594 = vpop.f32.mrf.mxu0
      %595 = vmatprep.mubr.bf16.mxu0 0
      %596 = vmatmul.mubr.bf16.gmra.mxu0 %v446
      %v597 = vpop.f32.mrf.mxu0
      %v598 = vadd.f32 %v345, %v597
      %v599 = vpop.f32.mrf.mxu0
      %v600 = vpop.f32.mrf.mxu0
      %v601 = vadd.f32 %v345, %v600
      %v602 = vpop.f32.mrf.mxu0
      %603 = vmatprep.mubr.bf16.mxu0 0
      %604 = vmatmul.mubr.bf16.gmra.mxu0 %v447
      %v605 = vpop.f32.mrf.mxu0
      %v606 = vadd.f32 %v345, %v605
      %v607 = vpop.f32.mrf.mxu0
      %v608 = vpop.f32.mrf.mxu0
      %v609 = vadd.f32 %v345, %v608
      %v610 = vpop.f32.mrf.mxu0
      %611 = vmatprep.mubr.bf16.mxu0 0
      %612 = vmatmul.mubr.bf16.gmra.mxu0 %v448
      %v613 = vpop.f32.mrf.mxu0
      %v614 = vadd.f32 %v345, %v613
      %v615 = vpop.f32.mrf.mxu0
      %v616 = vpop.f32.mrf.mxu0
      %v617 = vadd.f32 %v345, %v616
      %v618 = vpop.f32.mrf.mxu0
      %619 = vmatprep.mubr.bf16.mxu0 0
      %620 = vmatmul.mubr.bf16.gmra.mxu0 %v449
      %v621 = vpop.f32.mrf.mxu0
      %v622 = vadd.f32 %v345, %v621
      %v623 = vpop.f32.mrf.mxu0
      %v624 = vpop.f32.mrf.mxu0
      %v625 = vadd.f32 %v345, %v624
      %v626 = vpop.f32.mrf.mxu0
      %627 = vmatprep.mubr.bf16.mxu0 0
      %628 = vmatmul.mubr.bf16.gmra.mxu0 %v450
      %v629 = vpop.f32.mrf.mxu0
      %v630 = vadd.f32 %v345, %v629
      %v631 = vpop.f32.mrf.mxu0
      %v632 = vpop.f32.mrf.mxu0
      %v633 = vadd.f32 %v345, %v632
      %v634 = vpop.f32.mrf.mxu0
      %635 = vmatprep.mubr.bf16.mxu0 0
      %636 = vmatmul.mubr.bf16.gmra.mxu0 %v451
      %v637 = vpop.f32.mrf.mxu0
      %v638 = vadd.f32 %v345, %v637
      %v639 = vpop.f32.mrf.mxu0
      %v640 = vpop.f32.mrf.mxu0
      %v641 = vadd.f32 %v345, %v640
      %v642 = vpop.f32.mrf.mxu0
      %643 = vmatprep.mubr.bf16.mxu0 0
      %644 = vmatmul.mubr.bf16.gmra.mxu0 %v452
      %v645 = vpop.f32.mrf.mxu0
      %v646 = vadd.f32 %v345, %v645
      %v647 = vpop.f32.mrf.mxu0
      %v648 = vpop.f32.mrf.mxu0
      %v649 = vadd.f32 %v345, %v648
      %v650 = vpop.f32.mrf.mxu0
      %651 = vmatprep.mubr.bf16.mxu0 0
      %652 = vmatmul.mubr.bf16.gmra.mxu0 %v453
      %v653 = vpop.f32.mrf.mxu0
      %v654 = vadd.f32 %v345, %v653
      %v655 = vpop.f32.mrf.mxu0
      %v656 = vpop.f32.mrf.mxu0
      %v657 = vadd.f32 %v345, %v656
      %v658 = vpop.f32.mrf.mxu0
      %659 = vmatprep.mubr.bf16.mxu0 0
      %660 = vmatmul.mubr.bf16.gmra.mxu0 %v454
      %v661 = vpop.f32.mrf.mxu0
      %v662 = vadd.f32 %v345, %v661
      %v663 = vpop.f32.mrf.mxu0
      %v664 = vpop.f32.mrf.mxu0
      %v665 = vadd.f32 %v345, %v664
      %v666 = vpop.f32.mrf.mxu0
      %667 = vmatprep.mubr.bf16.mxu0 0
      %668 = vmatmul.mubr.bf16.gmra.mxu0 %v455
      %v669 = vpop.f32.mrf.mxu0
      %v670 = vadd.f32 %v345, %v669
      %v671 = vpop.f32.mrf.mxu0
      %v672 = vpop.f32.mrf.mxu0
      %v673 = vadd.f32 %v345, %v672
      %v674 = vpop.f32.mrf.mxu0
      %675 = vmatprep.mubr.bf16.mxu0 0
      %676 = vmatmul.mubr.bf16.gmra.mxu0 %v456
      %v677 = vpop.f32.mrf.mxu0
      %v678 = vadd.f32 %v345, %v677
      %v679 = vpop.f32.mrf.mxu0
      %v680 = vpop.f32.mrf.mxu0
      %v681 = vadd.f32 %v345, %v680
      %v682 = vpop.f32.mrf.mxu0
      %683 = vmatprep.mubr.bf16.mxu0 0
      %684 = vmatmul.mubr.bf16.gmra.mxu0 %v457
      %v685 = vpop.f32.mrf.mxu0
      %v686 = vadd.f32 %v345, %v685
      %v687 = vpop.f32.mrf.mxu0
      %v688 = vpop.f32.mrf.mxu0
      %v689 = vadd.f32 %v345, %v688
      %v690 = vpop.f32.mrf.mxu0
      %691 = vmatprep.mubr.bf16.mxu0 0
      %692 = vmatmul.mubr.bf16.gmra.mxu0 %v458
      %v693 = vpop.f32.mrf.mxu0
      %v694 = vadd.f32 %v345, %v693
      %v695 = vpop.f32.mrf.mxu0
      %v696 = vpop.f32.mrf.mxu0
      %v697 = vadd.f32 %v345, %v696
      %v698 = vpop.f32.mrf.mxu0
      %699 = vmatprep.mubr.bf16.mxu0 0
      %700 = vmatmul.mubr.bf16.gmra.mxu0 %v459
      %v701 = vpop.f32.mrf.mxu0
      %v702 = vadd.f32 %v345, %v701
      %v703 = vpop.f32.mrf.mxu0
      %v704 = vpop.f32.mrf.mxu0
      %v705 = vadd.f32 %v345, %v704
      %v706 = vpop.f32.mrf.mxu0
      %707 = vmatprep.mubr.bf16.mxu0 0
      %708 = vmatmul.mubr.bf16.gmra.mxu0 %v460
      %v709 = vpop.f32.mrf.mxu0
      %v710 = vadd.f32 %v345, %v709
      %v711 = vpop.f32.mrf.mxu0
      %v712 = vpop.f32.mrf.mxu0
      %v713 = vadd.f32 %v345, %v712
      %v714 = vpop.f32.mrf.mxu0
      %715 = vmatprep.mubr.bf16.mxu0 0
      %716 = vmatmul.mubr.bf16.gmra.mxu0 %v461
      %v717 = vpop.f32.mrf.mxu0
      %v718 = vadd.f32 %v345, %v717
      %v719 = vpop.f32.mrf.mxu0
      %v720 = vpop.f32.mrf.mxu0
      %v721 = vadd.f32 %v345, %v720
      %v722 = vpop.f32.mrf.mxu0
      %723 = vmatprep.mubr.bf16.mxu0 0
      %724 = vmatmul.mubr.bf16.gmra.mxu0 %v462
      %v725 = vpop.f32.mrf.mxu0
      %v726 = vadd.f32 %v345, %v725
      %v727 = vpop.f32.mrf.mxu0
      %v728 = vpop.f32.mrf.mxu0
      %v729 = vadd.f32 %v345, %v728
      %v730 = vpop.f32.mrf.mxu0
      %731 = vmatprep.mubr.bf16.mxu0 0
      %732 = vmatmul.mubr.bf16.gmra.mxu0 %v463
      %v733 = vpop.f32.mrf.mxu0
      %v734 = vadd.f32 %v345, %v733
      %v735 = vpop.f32.mrf.mxu0
      %v736 = vpop.f32.mrf.mxu0
      %v737 = vadd.f32 %v345, %v736
      %v738 = vpop.f32.mrf.mxu0
      %739 = vmatprep.mubr.bf16.mxu0 0
      %740 = vmatmul.mubr.bf16.gmra.mxu0 %v464
      %v741 = vpop.f32.mrf.mxu0
      %v742 = vadd.f32 %v345, %v741
      %v743 = vpop.f32.mrf.mxu0
      %v744 = vpop.f32.mrf.mxu0
      %v745 = vadd.f32 %v345, %v744
      %v746 = vpop.f32.mrf.mxu0
      %747 = vmatprep.mubr.bf16.mxu0 0
      %748 = vmatmul.mubr.bf16.gmra.mxu0 %v465
      %v749 = vpop.f32.mrf.mxu0
      %v750 = vadd.f32 %v345, %v749
      %v751 = vpop.f32.mrf.mxu0
      %v752 = vpop.f32.mrf.mxu0
      %v753 = vadd.f32 %v345, %v752
      %v754 = vpop.f32.mrf.mxu0
      %755 = vmatprep.mubr.bf16.mxu0 0
      %756 = vmatmul.mubr.bf16.gmra.mxu0 %v466
      %v757 = vpop.f32.mrf.mxu0
      %v758 = vadd.f32 %v345, %v757
      %v759 = vpop.f32.mrf.mxu0
      %v760 = vpop.f32.mrf.mxu0
      %v761 = vadd.f32 %v345, %v760
      %v762 = vpop.f32.mrf.mxu0
      %763 = vdwg.mxu0
      %v764 = vmax.f32 %v574, 0.0
      %v765 = vmax.f32 %v577, 0.0
      %v766 = vmax.f32 %v582, 0.0
      %v767 = vmax.f32 %v585, 0.0
      %v768 = vmax.f32 %v590, 0.0
      %v769 = vmax.f32 %v593, 0.0
      %v770 = vmax.f32 %v598, 0.0
      %v771 = vmax.f32 %v601, 0.0
      %v772 = vmax.f32 %v606, 0.0
      %v773 = vmax.f32 %v609, 0.0
      %v774 = vmax.f32 %v614, 0.0
      %v775 = vmax.f32 %v617, 0.0
      %v776 = vmax.f32 %v622, 0.0
      %v777 = vmax.f32 %v625, 0.0
      %v778 = vmax.f32 %v630, 0.0
      %v779 = vmax.f32 %v633, 0.0
      %v780 = vmax.f32 %v638, 0.0
      %v781 = vmax.f32 %v641, 0.0
      %v782 = vmax.f32 %v646, 0.0
      %v783 = vmax.f32 %v649, 0.0
      %v784 = vmax.f32 %v654, 0.0
      %v785 = vmax.f32 %v657, 0.0
      %v786 = vmax.f32 %v662, 0.0
      %v787 = vmax.f32 %v665, 0.0
      %v788 = vmax.f32 %v670, 0.0
      %v789 = vmax.f32 %v673, 0.0
      %v790 = vmax.f32 %v678, 0.0
      %v791 = vmax.f32 %v681, 0.0
      %v792 = vmax.f32 %v686, 0.0
      %v793 = vmax.f32 %v689, 0.0
      %v794 = vmax.f32 %v694, 0.0
      %v795 = vmax.f32 %v697, 0.0
      %v796 = vmax.f32 %v702, 0.0
      %v797 = vmax.f32 %v705, 0.0
      %v798 = vmax.f32 %v710, 0.0
      %v799 = vmax.f32 %v713, 0.0
      %v800 = vmax.f32 %v718, 0.0
      %v801 = vmax.f32 %v721, 0.0
      %v802 = vmax.f32 %v726, 0.0
      %v803 = vmax.f32 %v729, 0.0
      %v804 = vmax.f32 %v734, 0.0
      %v805 = vmax.f32 %v737, 0.0
      %v806 = vmax.f32 %v742, 0.0
      %v807 = vmax.f32 %v745, 0.0
      %v808 = vmax.f32 %v750, 0.0
      %v809 = vmax.f32 %v753, 0.0
      %v810 = vmax.f32 %v758, 0.0
      %v811 = vmax.f32 %v761, 0.0
      %v812 = vpack.c.bf16 %v765, %v764
      %v813 = vpack.c.bf16 %v767, %v766
      %v814 = vpack.c.bf16 %v769, %v768
      %v815 = vpack.c.bf16 %v771, %v770
      %v816 = vpack.c.bf16 %v773, %v772
      %v817 = vpack.c.bf16 %v775, %v774
      %v818 = vpack.c.bf16 %v777, %v776
      %v819 = vpack.c.bf16 %v779, %v778
      %v820 = vpack.c.bf16 %v781, %v780
      %v821 = vpack.c.bf16 %v783, %v782
      %v822 = vpack.c.bf16 %v785, %v784
      %v823 = vpack.c.bf16 %v787, %v786
      %v824 = vpack.c.bf16 %v789, %v788
      %v825 = vpack.c.bf16 %v791, %v790
      %v826 = vpack.c.bf16 %v793, %v792
      %v827 = vpack.c.bf16 %v795, %v794
      %v828 = vpack.c.bf16 %v797, %v796
      %v829 = vpack.c.bf16 %v799, %v798
      %v830 = vpack.c.bf16 %v801, %v800
      %v831 = vpack.c.bf16 %v803, %v802
      %v832 = vpack.c.bf16 %v805, %v804
      %v833 = vpack.c.bf16 %v807, %v806
      %v834 = vpack.c.bf16 %v809, %v808
      %v835 = vpack.c.bf16 %v811, %v810
      %v836 = vld [vmem:[%s4] sm:$0xf]
      %v837 = vld [vmem:[%s4 + $0x4] sm:$0xf]
      %v838 = vld [vmem:[%s4 + $0x8] sm:$0xf]
      %v839 = vld [vmem:[%s4 + $0xc] sm:$0xf]
      %v840 = vld [vmem:[%s4 + $0x10] sm:$0xf]
      %v841 = vld [vmem:[%s4 + $0x14] sm:$0xf]
      %v842 = vld [vmem:[%s4 + $0x18] sm:$0xf]
      %v843 = vld [vmem:[%s4 + $0x1c] sm:$0xf]
      %v844 = vld [vmem:[%s4 + $0x20] sm:$0xf]
      %v845 = vld [vmem:[%s4 + $0x24] sm:$0xf]
      %v846 = vld [vmem:[%s4 + $0x28] sm:$0xf]
      %v847 = vld [vmem:[%s4 + $0x2c] sm:$0xf]
      %v848 = vld [vmem:[%s4 + $0x30] sm:$0xf]
      %v849 = vld [vmem:[%s4 + $0x34] sm:$0xf]
      %v850 = vld [vmem:[%s4 + $0x38] sm:$0xf]
      %v851 = vld [vmem:[%s4 + $0x3c] sm:$0xf]
      %v868 = vunpack.c.l.b16 %v836
      %v869 = vunpack.c.l.b16 %v837
      %v870 = vunpack.c.l.b16 %v838
      %v871 = vunpack.c.l.b16 %v839
      %v872 = vunpack.c.l.b16 %v840
      %v873 = vunpack.c.l.b16 %v841
      %v874 = vunpack.c.l.b16 %v842
      %v875 = vunpack.c.l.b16 %v843
      %v876 = vunpack.c.l.b16 %v844
      %v877 = vunpack.c.l.b16 %v845
      %v878 = vunpack.c.l.b16 %v846
      %v879 = vunpack.c.l.b16 %v847
      %v880 = vunpack.c.l.b16 %v848
      %v881 = vunpack.c.l.b16 %v849
      %v882 = vunpack.c.l.b16 %v850
      %v883 = vunpack.c.l.b16 %v851
      %v884 = vpack.c.b16 %v869, %v868
      %v885 = vpack.c.b16 %v871, %v870
      %v886 = vpack.c.b16 %v873, %v872
      %v887 = vpack.c.b16 %v875, %v874
      %v888 = vpack.c.b16 %v877, %v876
      %v889 = vpack.c.b16 %v879, %v878
      %v890 = vpack.c.b16 %v881, %v880
      %v891 = vpack.c.b16 %v883, %v882
      %900 = vmatprep.subr.bf16.mxu0 0
      %901 = vmatpush1.bf16.msra.mxu0 %v891
      %902 = vmatprep.subr.bf16.mxu0 0
      %903 = vmatpush1.bf16.msra.mxu0 %v890
      %904 = vmatprep.subr.bf16.mxu0 0
      %905 = vmatpush1.bf16.msra.mxu0 %v889
      %906 = vmatprep.subr.bf16.mxu0 0
      %907 = vmatpush1.bf16.msra.mxu0 %v888
      %908 = vmatprep.subr.bf16.mxu0 0
      %909 = vmatpush1.bf16.msra.mxu0 %v887
      %910 = vmatprep.subr.bf16.mxu0 0
      %911 = vmatpush1.bf16.msra.mxu0 %v886
      %912 = vmatprep.subr.bf16.mxu0 0
      %913 = vmatpush1.bf16.msra.mxu0 %v885
      %914 = vmatprep.subr.bf16.mxu0 0
      %915 = vmatpush1.bf16.msra.mxu0 %v884
      %916 = vmatprep.subr.bf16.mxu0 0
      %917 = vmatpush2.bf16.msra.mxu0 0
      %918 = vmatprep.subr.bf16.mxu0 0
      %919 = vmatpush2.bf16.msra.mxu0 0
      %920 = vmatprep.subr.bf16.mxu0 0
      %921 = vmatpush2.bf16.msra.mxu0 0
      %922 = vmatprep.subr.bf16.mxu0 0
      %923 = vmatpush2.bf16.msra.mxu0 0
      %924 = vmatprep.subr.bf16.mxu0 0
      %925 = vmatpush2.bf16.msra.mxu0 0
      %926 = vmatprep.subr.bf16.mxu0 0
      %927 = vmatpush2.bf16.msra.mxu0 0
      %928 = vmatprep.subr.bf16.mxu0 0
      %929 = vmatpush2.bf16.msra.mxu0 0
      %930 = vmatprep.subr.bf16.mxu0 0
      %931 = vmatpush2.bf16.msra.mxu0 0
      %932 = vmatprep.mubr.bf16.mxu0 0
      %933 = vmatmul.mubr.bf16.gmra.mxu0 %v812
      %v934 = vpop.f32.mrf.mxu0
      %v935 = vadd.f32 0.0, %v934
      %v936 = vpop.f32.mrf.mxu0
      %v937 = vpop.f32.mrf.mxu0
      %v938 = vadd.f32 0.0, %v937
      %v939 = vpop.f32.mrf.mxu0
      %940 = vmatprep.mubr.bf16.mxu0 0
      %941 = vmatmul.mubr.bf16.gmra.mxu0 %v813
      %v942 = vpop.f32.mrf.mxu0
      %v943 = vadd.f32 0.0, %v942
      %v944 = vpop.f32.mrf.mxu0
      %v945 = vpop.f32.mrf.mxu0
      %v946 = vadd.f32 0.0, %v945
      %v947 = vpop.f32.mrf.mxu0
      %948 = vmatprep.mubr.bf16.mxu0 0
      %949 = vmatmul.mubr.bf16.gmra.mxu0 %v814
      %v950 = vpop.f32.mrf.mxu0
      %v951 = vadd.f32 0.0, %v950
      %v952 = vpop.f32.mrf.mxu0
      %v953 = vpop.f32.mrf.mxu0
      %v954 = vadd.f32 0.0, %v953
      %v955 = vpop.f32.mrf.mxu0
      %956 = vmatprep.mubr.bf16.mxu0 0
      %957 = vmatmul.mubr.bf16.gmra.mxu0 %v815
      %v958 = vpop.f32.mrf.mxu0
      %v959 = vadd.f32 0.0, %v958
      %v960 = vpop.f32.mrf.mxu0
      %v961 = vpop.f32.mrf.mxu0
      %v962 = vadd.f32 0.0, %v961
      %v963 = vpop.f32.mrf.mxu0
      %964 = vmatprep.mubr.bf16.mxu0 0
      %965 = vmatmul.mubr.bf16.gmra.mxu0 %v816
      %v966 = vpop.f32.mrf.mxu0
      %v967 = vadd.f32 0.0, %v966
      %v968 = vpop.f32.mrf.mxu0
      %v969 = vpop.f32.mrf.mxu0
      %v970 = vadd.f32 0.0, %v969
      %v971 = vpop.f32.mrf.mxu0
      %972 = vmatprep.mubr.bf16.mxu0 0
      %973 = vmatmul.mubr.bf16.gmra.mxu0 %v817
      %v974 = vpop.f32.mrf.mxu0
      %v975 = vadd.f32 0.0, %v974
      %v976 = vpop.f32.mrf.mxu0
      %v977 = vpop.f32.mrf.mxu0
      %v978 = vadd.f32 0.0, %v977
      %v979 = vpop.f32.mrf.mxu0
      %980 = vmatprep.mubr.bf16.mxu0 0
      %981 = vmatmul.mubr.bf16.gmra.mxu0 %v818
      %v982 = vpop.f32.mrf.mxu0
      %v983 = vadd.f32 0.0, %v982
      %v984 = vpop.f32.mrf.mxu0
      %v985 = vpop.f32.mrf.mxu0
      %v986 = vadd.f32 0.0, %v985
      %v987 = vpop.f32.mrf.mxu0
      %988 = vmatprep.mubr.bf16.mxu0 0
      %989 = vmatmul.mubr.bf16.gmra.mxu0 %v819
      %v990 = vpop.f32.mrf.mxu0
      %v991 = vadd.f32 0.0, %v990
      %v992 = vpop.f32.mrf.mxu0
      %v993 = vpop.f32.mrf.mxu0
      %v994 = vadd.f32 0.0, %v993
      %v995 = vpop.f32.mrf.mxu0
      %996 = vmatprep.mubr.bf16.mxu0 0
      %997 = vmatmul.mubr.bf16.gmra.mxu0 %v820
      %v998 = vpop.f32.mrf.mxu0
      %v999 = vadd.f32 0.0, %v998
      %v1000 = vpop.f32.mrf.mxu0
      %v1001 = vpop.f32.mrf.mxu0
      %v1002 = vadd.f32 0.0, %v1001
      %v1003 = vpop.f32.mrf.mxu0
      %1004 = vmatprep.mubr.bf16.mxu0 0
      %1005 = vmatmul.mubr.bf16.gmra.mxu0 %v821
      %v1006 = vpop.f32.mrf.mxu0
      %v1007 = vadd.f32 0.0, %v1006
      %v1008 = vpop.f32.mrf.mxu0
      %v1009 = vpop.f32.mrf.mxu0
      %v1010 = vadd.f32 0.0, %v1009
      %v1011 = vpop.f32.mrf.mxu0
      %1012 = vmatprep.mubr.bf16.mxu0 0
      %1013 = vmatmul.mubr.bf16.gmra.mxu0 %v822
      %v1014 = vpop.f32.mrf.mxu0
      %v1015 = vadd.f32 0.0, %v1014
      %v1016 = vpop.f32.mrf.mxu0
      %v1017 = vpop.f32.mrf.mxu0
      %v1018 = vadd.f32 0.0, %v1017
      %v1019 = vpop.f32.mrf.mxu0
      %1020 = vmatprep.mubr.bf16.mxu0 0
      %1021 = vmatmul.mubr.bf16.gmra.mxu0 %v823
      %v1022 = vpop.f32.mrf.mxu0
      %v1023 = vadd.f32 0.0, %v1022
      %v1024 = vpop.f32.mrf.mxu0
      %v1025 = vpop.f32.mrf.mxu0
      %v1026 = vadd.f32 0.0, %v1025
      %v1027 = vpop.f32.mrf.mxu0
      %1028 = vmatprep.mubr.bf16.mxu0 0
      %1029 = vmatmul.mubr.bf16.gmra.mxu0 %v824
      %v1030 = vpop.f32.mrf.mxu0
      %v1031 = vadd.f32 0.0, %v1030
      %v1032 = vpop.f32.mrf.mxu0
      %v1033 = vpop.f32.mrf.mxu0
      %v1034 = vadd.f32 0.0, %v1033
      %v1035 = vpop.f32.mrf.mxu0
      %1036 = vmatprep.mubr.bf16.mxu0 0
      %1037 = vmatmul.mubr.bf16.gmra.mxu0 %v825
      %v1038 = vpop.f32.mrf.mxu0
      %v1039 = vadd.f32 0.0, %v1038
      %v1040 = vpop.f32.mrf.mxu0
      %v1041 = vpop.f32.mrf.mxu0
      %v1042 = vadd.f32 0.0, %v1041
      %v1043 = vpop.f32.mrf.mxu0
      %1044 = vmatprep.mubr.bf16.mxu0 0
      %1045 = vmatmul.mubr.bf16.gmra.mxu0 %v826
      %v1046 = vpop.f32.mrf.mxu0
      %v1047 = vadd.f32 0.0, %v1046
      %v1048 = vpop.f32.mrf.mxu0
      %v1049 = vpop.f32.mrf.mxu0
      %v1050 = vadd.f32 0.0, %v1049
      %v1051 = vpop.f32.mrf.mxu0
      %1052 = vmatprep.mubr.bf16.mxu0 0
      %1053 = vmatmul.mubr.bf16.gmra.mxu0 %v827
      %v1054 = vpop.f32.mrf.mxu0
      %v1055 = vadd.f32 0.0, %v1054
      %v1056 = vpop.f32.mrf.mxu0
      %v1057 = vpop.f32.mrf.mxu0
      %v1058 = vadd.f32 0.0, %v1057
      %v1059 = vpop.f32.mrf.mxu0
      %1060 = vmatprep.mubr.bf16.mxu0 0
      %1061 = vmatmul.mubr.bf16.gmra.mxu0 %v828
      %v1062 = vpop.f32.mrf.mxu0
      %v1063 = vadd.f32 0.0, %v1062
      %v1064 = vpop.f32.mrf.mxu0
      %v1065 = vpop.f32.mrf.mxu0
      %v1066 = vadd.f32 0.0, %v1065
      %v1067 = vpop.f32.mrf.mxu0
      %1068 = vmatprep.mubr.bf16.mxu0 0
      %1069 = vmatmul.mubr.bf16.gmra.mxu0 %v829
      %v1070 = vpop.f32.mrf.mxu0
      %v1071 = vadd.f32 0.0, %v1070
      %v1072 = vpop.f32.mrf.mxu0
      %v1073 = vpop.f32.mrf.mxu0
      %v1074 = vadd.f32 0.0, %v1073
      %v1075 = vpop.f32.mrf.mxu0
      %1076 = vmatprep.mubr.bf16.mxu0 0
      %1077 = vmatmul.mubr.bf16.gmra.mxu0 %v830
      %v1078 = vpop.f32.mrf.mxu0
      %v1079 = vadd.f32 0.0, %v1078
      %v1080 = vpop.f32.mrf.mxu0
      %v1081 = vpop.f32.mrf.mxu0
      %v1082 = vadd.f32 0.0, %v1081
      %v1083 = vpop.f32.mrf.mxu0
      %1084 = vmatprep.mubr.bf16.mxu0 0
      %1085 = vmatmul.mubr.bf16.gmra.mxu0 %v831
      %v1086 = vpop.f32.mrf.mxu0
      %v1087 = vadd.f32 0.0, %v1086
      %v1088 = vpop.f32.mrf.mxu0
      %v1089 = vpop.f32.mrf.mxu0
      %v1090 = vadd.f32 0.0, %v1089
      %v1091 = vpop.f32.mrf.mxu0
      %1092 = vmatprep.mubr.bf16.mxu0 0
      %1093 = vmatmul.mubr.bf16.gmra.mxu0 %v832
      %v1094 = vpop.f32.mrf.mxu0
      %v1095 = vadd.f32 0.0, %v1094
      %v1096 = vpop.f32.mrf.mxu0
      %v1097 = vpop.f32.mrf.mxu0
      %v1098 = vadd.f32 0.0, %v1097
      %v1099 = vpop.f32.mrf.mxu0
      %1100 = vmatprep.mubr.bf16.mxu0 0
      %1101 = vmatmul.mubr.bf16.gmra.mxu0 %v833
      %v1102 = vpop.f32.mrf.mxu0
      %v1103 = vadd.f32 0.0, %v1102
      %v1104 = vpop.f32.mrf.mxu0
      %v1105 = vpop.f32.mrf.mxu0
      %v1106 = vadd.f32 0.0, %v1105
      %v1107 = vpop.f32.mrf.mxu0
      %1108 = vmatprep.mubr.bf16.mxu0 0
      %1109 = vmatmul.mubr.bf16.gmra.mxu0 %v834
      %v1110 = vpop.f32.mrf.mxu0
      %v1111 = vadd.f32 0.0, %v1110
      %v1112 = vpop.f32.mrf.mxu0
      %v1113 = vpop.f32.mrf.mxu0
      %v1114 = vadd.f32 0.0, %v1113
      %v1115 = vpop.f32.mrf.mxu0
      %1116 = vmatprep.mubr.bf16.mxu0 0
      %1117 = vmatmul.mubr.bf16.gmra.mxu0 %v835
      %v1118 = vpop.f32.mrf.mxu0
      %v1119 = vadd.f32 0.0, %v1118
      %v1120 = vpop.f32.mrf.mxu0
      %v1121 = vpop.f32.mrf.mxu0
      %v1122 = vadd.f32 0.0, %v1121
      %v1123 = vpop.f32.mrf.mxu0
      %1124 = vdwg.mxu0
      %v1125 = vlaneseq
      %v1126 = vshrl.u32 %v1125, 7
      %v1127 = vld [vmem:[%s255] sm:$0x7]
      %v1128 = vlaneseq
      %v1129 = vshrl.u32 %v1128, 7
      %v1130 = vsub.s32 0, %v1129
      %v1131 = vrot.slane %v1127, %v1130
      %v1132 = vlaneseq
      %v1133 = vshrl.u32 %v1132, 7
      %v1134 = vsub.s32 1, %v1133
      %v1135 = vrot.slane %v1127, %v1134
      %v1136 = vlaneseq
      %v1137 = vshrl.u32 %v1136, 7
      %v1138 = vsub.s32 2, %v1137
      %v1139 = vrot.slane %v1127, %v1138
      %vm1140 = vcmp.eq.s32.totalorder %v1131, %v1126
      %vm1141 = vcmp.eq.s32.totalorder %v1135, %v1126
      %vm1142 = vcmp.eq.s32.totalorder %v1139, %v1126
      %v1143 = vsel %vm1140, 1, 0
      %v1144 = vsel %vm1141, 1, 0
      %v1145 = vsel %vm1142, 1, 0
      %v1146 = vcvt.s32.f32 %v1143
      %v1147 = vcvt.s32.f32 %v1144
      %v1148 = vcvt.s32.f32 %v1145
      %v1149 = vpack.c.bf16 %v1146, %v1146
      %v1150 = vpack.c.bf16 %v1147, %v1147
      %v1151 = vpack.c.bf16 %v1148, %v1148
      %v1152 = vld [vmem:[%s269] sm:$0xff]
      %v1153 = vpack.c.bf16 %v938, %v935
      %v1154 = vpack.c.bf16 %v946, %v943
      %v1155 = vpack.c.bf16 %v954, %v951
      %v1156 = vpack.c.bf16 %v962, %v959
      %v1157 = vpack.c.bf16 %v970, %v967
      %v1158 = vpack.c.bf16 %v978, %v975
      %v1159 = vpack.c.bf16 %v986, %v983
      %v1160 = vpack.c.bf16 %v994, %v991
      %v1161 = vpack.c.bf16 %v1002, %v999
      %v1162 = vpack.c.bf16 %v1010, %v1007
      %v1163 = vpack.c.bf16 %v1018, %v1015
      %v1164 = vpack.c.bf16 %v1026, %v1023
      %v1165 = vpack.c.bf16 %v1034, %v1031
      %v1166 = vpack.c.bf16 %v1042, %v1039
      %v1167 = vpack.c.bf16 %v1050, %v1047
      %v1168 = vpack.c.bf16 %v1058, %v1055
      %v1169 = vpack.c.bf16 %v1066, %v1063
      %v1170 = vpack.c.bf16 %v1074, %v1071
      %v1171 = vpack.c.bf16 %v1082, %v1079
      %v1172 = vpack.c.bf16 %v1090, %v1087
      %v1173 = vpack.c.bf16 %v1098, %v1095
      %v1174 = vpack.c.bf16 %v1106, %v1103
      %v1175 = vpack.c.bf16 %v1114, %v1111
      %v1176 = vpack.c.bf16 %v1122, %v1119
      %1177 = vmatprep.subr.bf16.mxu0 0
      %1178 = vmatpush1.bf16.msra.mxu0 %v1160
      %1179 = vmatprep.subr.bf16.mxu0 0
      %1180 = vmatpush1.bf16.msra.mxu0 %v1159
      %1181 = vmatprep.subr.bf16.mxu0 0
      %1182 = vmatpush1.bf16.msra.mxu0 %v1158
      %1183 = vmatprep.subr.bf16.mxu0 0
      %1184 = vmatpush1.bf16.msra.mxu0 %v1157
      %1185 = vmatprep.subr.bf16.mxu0 0
      %1186 = vmatpush1.bf16.msra.mxu0 %v1156
      %1187 = vmatprep.subr.bf16.mxu0 0
      %1188 = vmatpush1.bf16.msra.mxu0 %v1155
      %1189 = vmatprep.subr.bf16.mxu0 0
      %1190 = vmatpush1.bf16.msra.mxu0 %v1154
      %1191 = vmatprep.subr.bf16.mxu0 0
      %1192 = vmatpush1.bf16.msra.mxu0 %v1153
      %1193 = vmatprep.subr.bf16.mxu0 0
      %1194 = vmatpush2.bf16.msra.mxu0 %v1168
      %1195 = vmatprep.subr.bf16.mxu0 0
      %1196 = vmatpush2.bf16.msra.mxu0 %v1167
      %1197 = vmatprep.subr.bf16.mxu0 0
      %1198 = vmatpush2.bf16.msra.mxu0 %v1166
      %1199 = vmatprep.subr.bf16.mxu0 0
      %1200 = vmatpush2.bf16.msra.mxu0 %v1165
      %1201 = vmatprep.subr.bf16.mxu0 0
      %1202 = vmatpush2.bf16.msra.mxu0 %v1164
      %1203 = vmatprep.subr.bf16.mxu0 0
      %1204 = vmatpush2.bf16.msra.mxu0 %v1163
      %1205 = vmatprep.subr.bf16.mxu0 0
      %1206 = vmatpush2.bf16.msra.mxu0 %v1162
      %1207 = vmatprep.subr.bf16.mxu0 0
      %1208 = vmatpush2.bf16.msra.mxu0 %v1161
      %1209 = vmatprep.mubr.bf16.mxu0 %v1150
      %1210 = vmatmul.mubr.bf16.gmra.mxu0 %v1149
      %v1211 = vpop.f32.mrf.mxu0
      %v1212 = vadd.f32 0.0, %v1211
      %v1213 = vpop.f32.mrf.mxu0
      %v1214 = vpop.f32.mrf.mxu0
      %v1215 = vpop.f32.mrf.mxu0
      %1216 = vdwg.mxu0
      %1217 = vmatprep.subr.bf16.mxu0 0
      %1218 = vmatpush1.bf16.msra.mxu0 %v1176
      %1219 = vmatprep.subr.bf16.mxu0 0
      %1220 = vmatpush1.bf16.msra.mxu0 %v1175
      %1221 = vmatprep.subr.bf16.mxu0 0
      %1222 = vmatpush1.bf16.msra.mxu0 %v1174
      %1223 = vmatprep.subr.bf16.mxu0 0
      %1224 = vmatpush1.bf16.msra.mxu0 %v1173
      %1225 = vmatprep.subr.bf16.mxu0 0
      %1226 = vmatpush1.bf16.msra.mxu0 %v1172
      %1227 = vmatprep.subr.bf16.mxu0 0
      %1228 = vmatpush1.bf16.msra.mxu0 %v1171
      %1229 = vmatprep.subr.bf16.mxu0 0
      %1230 = vmatpush1.bf16.msra.mxu0 %v1170
      %1231 = vmatprep.subr.bf16.mxu0 0
      %1232 = vmatpush1.bf16.msra.mxu0 %v1169
      %1233 = vmatprep.subr.bf16.mxu0 0
      %1234 = vmatpush2.bf16.msra.mxu0 0
      %1235 = vmatprep.subr.bf16.mxu0 0
      %1236 = vmatpush2.bf16.msra.mxu0 0
      %1237 = vmatprep.subr.bf16.mxu0 0
      %1238 = vmatpush2.bf16.msra.mxu0 0
      %1239 = vmatprep.subr.bf16.mxu0 0
      %1240 = vmatpush2.bf16.msra.mxu0 0
      %1241 = vmatprep.subr.bf16.mxu0 0
      %1242 = vmatpush2.bf16.msra.mxu0 0
      %1243 = vmatprep.subr.bf16.mxu0 0
      %1244 = vmatpush2.bf16.msra.mxu0 0
      %1245 = vmatprep.subr.bf16.mxu0 0
      %1246 = vmatpush2.bf16.msra.mxu0 0
      %1247 = vmatprep.subr.bf16.mxu0 0
      %1248 = vmatpush2.bf16.msra.mxu0 0
      %1249 = vmatprep.mubr.bf16.mxu0 0
      %1250 = vmatmul.mubr.bf16.gmra.mxu0 %v1151
      %v1251 = vpop.f32.mrf.mxu0
      %v1252 = vadd.f32 %v1212, %v1251
      %v1253 = vpop.f32.mrf.mxu0
      %v1254 = vpop.f32.mrf.mxu0
      %v1255 = vpop.f32.mrf.mxu0
      %1256 = vdwg.mxu0
      %v1257 = vadd.f32 %v1152, %v1252
      %1258 = vst [vmem:[%s269] sm:$0xff] %v1257
      %p1259 = scmp.lt.s32.totalorder %s20, 1
      %s1260 = scalar_select %p1259, %s20, 1
      %s1261 = smul.addr %s1260, 8
      %s1262 = scalar_lea.vmem %s5, %s1261
      // Predicated region
      $region45: #{encoder_decoder_forward.2} parent=39 // pred_check
        %p1263 = pneg %p165
      $region46: #{encoder_decoder_forward.2} parent=39 // pred_check_branch
        %1265 = sbr.rel (%p1263) target = $region48
      $region47: #{encoder_decoder_forward.2} parent=39 // pred_region
        _
      $region48: #{encoder_decoder_forward.2} parent=39 // pred_fallthru
        _
    $region40: #{encoder_decoder_forward.2} parent=5 // pred_fallthru
      _
    %p1266 = scmp.le.s32.totalorder 2, %s11
    // Predicated region
    $region49: #{encoder_decoder_forward.2} parent=5 // pred_check
      %p1267 = pneg %p1266
    $region50: #{encoder_decoder_forward.2} parent=5 // pred_check_branch
      %1269 = sbr.rel (%p1267) target = $region52
    $region51: #{encoder_decoder_forward.2} parent=5 // pred_region
      %s1270 = ssub.s32 %s11, 2
      // Predicated region
      $region53: #{encoder_decoder_forward.2} parent=51 // pred_check
        %p1271 = pneg %p171
      $region54: #{encoder_decoder_forward.2} parent=51 // pred_check_branch
        %1273 = sbr.rel (%p1271) target = $region56
      $region55: #{encoder_decoder_forward.2} parent=51 // pred_region
        %p1274 = scmp.lt.s32.totalorder %s22, 1
        %s1275 = scalar_select %p1274, %s22, 1
        %s1276 = smul.addr %s1275, 8
        %s1277 = scalar_lea.vmem %s5, %s1276
      $region56: #{encoder_decoder_forward.2} parent=51 // pred_fallthru
        _
    $region52: #{encoder_decoder_forward.2} parent=5 // pred_fallthru
      _
  $region6: #{encoder_decoder_forward.2} parent=0 // loop_footer
    %s15 = sadd.s32 1, %s11
  $region7: #{encoder_decoder_forward.2} parent=0 // loop_footer_branch
    %10 = sbr.rel target = $region3
  $region8: #{encoder_decoder_forward.2} parent=0 // loop_exit
    _

</llo_original>
